<compile_context>
chip_gen: v6e
topology: v6e:2x2x1
jax: 0.10.0
libtpu: 0.0.40
codegen_flags: <defaults>
</compile_context>

<pallas_src>
import jax
import jax.numpy as jnp
from jax.experimental import pallas as pl
from jax.experimental.pallas import tpu as pltpu


_TARGET_BLOCK_BYTES = 4 * 1024 * 1024   # ~2-8 MiB sigma tiles: HBM-roofline sweet spot
_VMEM_LIMIT_BYTES = 32 * 1024 * 1024    # >= double-buffered footprint; safe on v5e/v6e/v7x


def _largest_divisor_leq(n, cap):
    cap = max(1, min(n, cap))
    for d in range(cap, 0, -1):
        if n % d == 0:
            return d
    return 1


def _choose_tiling(G, N, itemsize, target_bytes):
    """Pick (Gb groups, TM rows) per grid step so one resident block is ~target_bytes."""
    # Per-group resident bytes per pipeline buffer: sigma tile (N*N) plus the
    # lane-padded (N, 1) sublane-major copy of mu (pads to 128 lanes in VMEM).
    per_group = N * N * itemsize + N * 128 * itemsize
    if per_group <= target_bytes:
        gb_cap = target_bytes // per_group
        if G > 1:
            # Keep at least 2 grid steps so the DMA pipeline / megacore have work.
            gb_cap = min(gb_cap, max(1, G // 2))
        return _largest_divisor_leq(G, int(gb_cap)), N

    # Large N: slab the N x N plane into (TM, N) row tiles, TM | N, sublane aligned.
    row_align = 8 * max(1, 4 // itemsize)   # 8 rows (f32), 16 (bf16), 32 (int8)
    tm_cap = max(row_align, target_bytes // (N * itemsize))
    tm = None
    for cand in range(row_align, min(N, int(tm_cap)) + 1, row_align):
        if N % cand == 0:
            tm = cand
    if tm is None:
        tm = N   # no aligned divisor of N: fall back to full-dim rows (always legal)
    return 1, tm


def _evi_relu_kernel(mu_row_ref, mu_col_ref, sigma_ref, mu_g_ref, sigma_g_ref):
    """One grid step handles Gb groups x TM rows of the N x N sigma plane.

    mu_row_ref : (Gb, 1, N)    lane-major mu    (full mask row per group)
    mu_col_ref : (Gb, TM, 1)   sublane-major mu (mask rows for this slab)
    sigma_ref  : (Gb, TM, N)
    mu_g_ref   : (Gb, 1, N)    relu(mu)
    sigma_g_ref: (Gb, TM, N)   sigma * outer(mask, mask) slab
    """
    mu_row = mu_row_ref[...]
    # ReLU forward (idempotent across row slabs of the same group).
    mu_g_ref[...] = jnp.maximum(mu_row, 0.0)
    # grad_square[i, j] = (mu[i] > 0) & (mu[j] > 0); keep it boolean (no casts)
    # and fuse the sigma multiply as a select. Pure VPU broadcast work.
    keep = (mu_col_ref[...] > 0) & (mu_row > 0)          # (Gb, TM, N)
    sigma_g_ref[...] = jnp.where(keep, sigma_ref[...], 0.0)


def _evi_relu_pallas(mu_row, mu_col, sigma, target_block_bytes=_TARGET_BLOCK_BYTES):
    G, _, N = mu_row.shape
    itemsize = jnp.dtype(sigma.dtype).itemsize
    Gb, TM = _choose_tiling(G, N, itemsize, target_block_bytes)
    grid = (G // Gb, N // TM)

    return pl.pallas_call(
        _evi_relu_kernel,
        out_shape=(
            jax.ShapeDtypeStruct((G, 1, N), mu_row.dtype),
            jax.ShapeDtypeStruct((G, N, N), sigma.dtype),
        ),
        grid=grid,
        in_specs=[
            pl.BlockSpec((Gb, 1, N), lambda g, r: (g, 0, 0)),
            pl.BlockSpec((Gb, TM, 1), lambda g, r: (g, r, 0)),
            pl.BlockSpec((Gb, TM, N), lambda g, r: (g, r, 0)),
        ],
        out_specs=(
            pl.BlockSpec((Gb, 1, N), lambda g, r: (g, 0, 0)),
            pl.BlockSpec((Gb, TM, N), lambda g, r: (g, r, 0)),
        ),
        compiler_params=pltpu.CompilerParams(
            # Group axis shards across v7x's two TensorCores; the row-slab axis
            # is "arbitrary" since the relu output block is revisited over it.
            dimension_semantics=("parallel", "arbitrary"),
            vmem_limit_bytes=_VMEM_LIMIT_BYTES,
        ),
    )(mu_row, mu_col, sigma)


def evi_relu_4d(mu, sigma, target_block_bytes=_TARGET_BLOCK_BYTES):
    """mu: (B, C, H, W) NCHW; sigma: (B, C, H*W, H*W)."""
    B, C, H, W = mu.shape
    N = H * W
    G = B * C
    mu_row = mu.reshape(G, 1, N)
    mu_col = mu.reshape(G, N, 1)
    sigma_flat = sigma.reshape(G, N, N)
    mu_g, sigma_g = _evi_relu_pallas(mu_row, mu_col, sigma_flat, target_block_bytes)
    return mu_g.reshape(B, C, H, W), sigma_g.reshape(B, C, N, N)


def evi_relu_2d(mu, sigma, target_block_bytes=_TARGET_BLOCK_BYTES):
    """mu: (B, D); sigma: (B, D, D). Returns (relu(mu), sigma_g (B, 1, D, D))."""
    B, D = mu.shape
    mu_row = mu.reshape(B, 1, D)
    mu_col = mu.reshape(B, D, 1)
    mu_g, sigma_g = _evi_relu_pallas(mu_row, mu_col, sigma, target_block_bytes)
    return mu_g.reshape(B, D), sigma_g[:, None, :, :]


if __name__ == "__main__":
    key = jax.random.PRNGKey(0)
    k1, k2, k3, k4 = jax.random.split(key, 4)

    # ---- 4D (conv feature map) case ----
    B, C, H, W = 2, 4, 16, 16
    N = H * W
    mu4 = jax.random.normal(k1, (B, C, H, W), dtype=jnp.float32)
    sig4 = jax.random.normal(k2, (B, C, N, N), dtype=jnp.float32)

    mu_g4, sigma_g4 = evi_relu_4d(mu4, sig4)
    jax.block_until_ready((mu_g4, sigma_g4))

    mask4 = (mu4 > 0).astype(jnp.float32).reshape(B, C, N)
    ref_gs4 = sig4 * (mask4[:, :, :, None] * mask4[:, :, None, :])
    assert mu_g4.shape == (B, C, H, W) and sigma_g4.shape == (B, C, N, N)
    assert jnp.allclose(mu_g4, jnp.maximum(mu4, 0.0))
    assert jnp.allclose(sigma_g4, ref_gs4)

    # ---- 4D again, forcing the large-N row-slab path (tiny block target) ----
    mu_g4b, sigma_g4b = evi_relu_4d(mu4, sig4, target_block_bytes=64 * 1024)
    jax.block_until_ready((mu_g4b, sigma_g4b))
    assert jnp.allclose(mu_g4b, jnp.maximum(mu4, 0.0))
    assert jnp.allclose(sigma_g4b, ref_gs4)

    # ---- 2D (fully-connected) case ----
    B2, D = 2, 128
    mu2 = jax.random.normal(k3, (B2, D), dtype=jnp.float32)
    sig2 = jax.random.normal(k4, (B2, D, D), dtype=jnp.float32)

    mu_g2, sigma_g2 = evi_relu_2d(mu2, sig2)
    jax.block_until_ready((mu_g2, sigma_g2))

    mask2 = (mu2 > 0).astype(jnp.float32)
    ref_gs2 = sig2 * (mask2[:, :, None] * mask2[:, None, :])
    assert mu_g2.shape == (B2, D) and sigma_g2.shape == (B2, 1, D, D)
    assert jnp.allclose(mu_g2, jnp.maximum(mu2, 0.0))
    assert jnp.allclose(sigma_g2, ref_gs2[:, None])

    print("KERNEL_OK")
</pallas_src>

<mosaic_0001>
module attributes {stable_mosaic.version = 11 : i64} {
  func.func @_evi_relu_kernel(%arg0: i32, %arg1: i32, %arg2: memref<4x1x256xf32, #tpu.memory_space<vmem>>, %arg3: memref<4x256x1xf32, #tpu.memory_space<vmem>>, %arg4: memref<4x256x256xf32, #tpu.memory_space<vmem>>, %arg5: memref<4x1x256xf32, #tpu.memory_space<vmem>>, %arg6: memref<4x256x256xf32, #tpu.memory_space<vmem>>) attributes {dimension_semantics = [#tpu.dimension_semantics<parallel>, #tpu.dimension_semantics<arbitrary>], iteration_bounds = array<i64: 2, 1>, scalar_prefetch = 0 : i64, scratch_operands = 0 : i64, tpu.core_type = #tpu.core_type<tc>, window_params = [{transform_indices = @transform_0, window_bounds = array<i64: 4, 1, 256>}, {transform_indices = @transform_1, window_bounds = array<i64: 4, 256, 1>}, {transform_indices = @transform_2, window_bounds = array<i64: 4, 256, 256>}, {transform_indices = @transform_3, window_bounds = array<i64: 4, 1, 256>}, {transform_indices = @transform_4, window_bounds = array<i64: 4, 256, 256>}]} {
    %c0 = arith.constant 0 : index
    %c0_0 = arith.constant 0 : index
    %c0_1 = arith.constant 0 : index
    %0 = vector.load %arg2[%c0, %c0_0, %c0_1] : memref<4x1x256xf32, #tpu.memory_space<vmem>>, vector<4x1x256xf32>
    %cst = arith.constant 0.000000e+00 : f32
    %1 = vector.broadcast %cst : f32 to vector<4x1x256xf32>
    %2 = arith.maximumf %0, %1 : vector<4x1x256xf32>
    %c0_2 = arith.constant 0 : index
    %c0_3 = arith.constant 0 : index
    %c0_4 = arith.constant 0 : index
    %3 = vector.load %arg5[%c0_2, %c0_3, %c0_4] : memref<4x1x256xf32, #tpu.memory_space<vmem>>, vector<4x1x256xf32>
    tpu.vector_store %arg5[%c0_2, %c0_3, %c0_4], %2 {strides = array<i32>} : memref<4x1x256xf32, #tpu.memory_space<vmem>>, vector<4x1x256xf32>,
    %c0_5 = arith.constant 0 : index
    %c0_6 = arith.constant 0 : index
    %c0_7 = arith.constant 0 : index
    %4 = vector.load %arg3[%c0_5, %c0_6, %c0_7] : memref<4x256x1xf32, #tpu.memory_space<vmem>>, vector<4x256x1xf32>
    %cst_8 = arith.constant 0.000000e+00 : f32
    %5 = vector.broadcast %cst_8 : f32 to vector<4x256x1xf32>
    %6 = arith.cmpf ogt, %4, %5 : vector<4x256x1xf32>
    %cst_9 = arith.constant 0.000000e+00 : f32
    %7 = vector.broadcast %cst_9 : f32 to vector<4x1x256xf32>
    %8 = arith.cmpf ogt, %0, %7 : vector<4x1x256xf32>
    %9 = vector.broadcast %6 : vector<4x256x1xi1> to vector<4x256x256xi1>
    %10 = vector.broadcast %8 : vector<4x1x256xi1> to vector<4x256x256xi1>
    %11 = arith.andi %9, %10 : vector<4x256x256xi1>
    %c0_10 = arith.constant 0 : index
    %c0_11 = arith.constant 0 : index
    %c0_12 = arith.constant 0 : index
    %12 = vector.load %arg4[%c0_10, %c0_11, %c0_12] : memref<4x256x256xf32, #tpu.memory_space<vmem>>, vector<4x256x256xf32>
    %cst_13 = arith.constant 0.000000e+00 : f32
    %13 = vector.broadcast %cst_13 : f32 to vector<4x256x256xf32>
    %14 = arith.select %11, %12, %13 : vector<4x256x256xi1>, vector<4x256x256xf32>
    %c0_14 = arith.constant 0 : index
    %c0_15 = arith.constant 0 : index
    %c0_16 = arith.constant 0 : index
    %15 = vector.load %arg6[%c0_14, %c0_15, %c0_16] : memref<4x256x256xf32, #tpu.memory_space<vmem>>, vector<4x256x256xf32>
    tpu.vector_store %arg6[%c0_14, %c0_15, %c0_16], %14 {strides = array<i32>} : memref<4x256x256xf32, #tpu.memory_space<vmem>>, vector<4x256x256xf32>,
    return
  }
  func.func @transform_0(%arg0: i32, %arg1: i32) -> (i32, i32, i32) {
    %c0_i32 = arith.constant 0 : i32
    %c0_i32_0 = arith.constant 0 : i32
    %c0_i32_1 = arith.constant 0 : i32
    return %arg0, %c0_i32, %c0_i32_0 : i32, i32, i32
  }
  func.func @transform_1(%arg0: i32, %arg1: i32) -> (i32, i32, i32) {
    %c0_i32 = arith.constant 0 : i32
    %c0_i32_0 = arith.constant 0 : i32
    return %arg0, %arg1, %c0_i32 : i32, i32, i32
  }
  func.func @transform_2(%arg0: i32, %arg1: i32) -> (i32, i32, i32) {
    %c0_i32 = arith.constant 0 : i32
    %c0_i32_0 = arith.constant 0 : i32
    return %arg0, %arg1, %c0_i32 : i32, i32, i32
  }
  func.func @transform_3(%arg0: i32, %arg1: i32) -> (i32, i32, i32) {
    %c0_i32 = arith.constant 0 : i32
    %c0_i32_0 = arith.constant 0 : i32
    %c0_i32_1 = arith.constant 0 : i32
    return %arg0, %c0_i32, %c0_i32_0 : i32, i32, i32
  }
  func.func @transform_4(%arg0: i32, %arg1: i32) -> (i32, i32, i32) {
    %c0_i32 = arith.constant 0 : i32
    %c0_i32_0 = arith.constant 0 : i32
    return %arg0, %arg1, %c0_i32 : i32, i32, i32
  }
}

</mosaic_0001>

<llo_original>
// kernel: tpu_custom_call.1
$region0: #{tpu_custom_call.1}
  #allocation0 [shape = 'u32[]', space=smem, size = 0x4, offset = 0x4, fixed_abs, tag = 'smem constant byte address 0x4 - core index']
  #allocation1 [shape = 'u32[144,128]{1,0:T(1,128)}', space=vmem, size = 0x12000, scoped, tag = 'internal scratch']
  %s0 = inlined_call_operand.hbm [shape: f32[8,1,256], index: 0, kind: input, shape index: {}]
  %s1 = inlined_call_operand.vmem [shape: f32[8,256,1], index: 1, kind: input, shape index: {}]
  %s2 = inlined_call_operand.hbm [shape: f32[8,256,256], index: 2, kind: input, shape index: {}]
  %s3 = inlined_call_operand.hbm [shape: f32[8,1,256], index: 3, kind: output, shape index: {0}]
  %s4 = inlined_call_operand.hbm [shape: f32[8,256,256], index: 4, kind: output, shape index: {1}]
  %5 = xla_tuple %s3, %s4
  %s6 = sld [smem:[#allocation0]]
  $region61: #{tpu_custom_call.1} parent=0
    _
  %s8 = ssub.s32 1, %s6
  %s9 = scalar_select 0, %s8, %s6
  $region1: #{tpu_custom_call.1} parent=0
    #allocation2 [shape = 'u8[8192]{0}', space=vmem, size = 0x2000, scoped, tag = 'input window, operand 0']
    #allocation3 [shape = 's32[2]{0}', space=sflag, size = 0x8, scoped, tag = 'scoped memory for tpu_custom_call.1']
    #allocation4 [shape = 's32[2]{0}', space=sflag, size = 0x8, scoped, tag = 'scoped memory for tpu_custom_call.1']
    #allocation5 [shape = 'u8[2097152]{0}', space=vmem, size = 0x200000, scoped, tag = 'input window, operand 2']
    #allocation6 [shape = 's32[2]{0}', space=sflag, size = 0x8, scoped, tag = 'scoped memory for tpu_custom_call.1']
    #allocation7 [shape = 'u8[8192]{0}', space=vmem, size = 0x2000, scoped, tag = 'output window, operand 0']
    #allocation8 [shape = 'u8[2097152]{0}', space=vmem, size = 0x200000, scoped, tag = 'output window, operand 1']
    #allocation9 [shape = 's32[2]{0}', space=sflag, size = 0x8, scoped, tag = 'scoped memory for tpu_custom_call.1']
    %10 = vsyncpa [#allocation3], 0
    %s11 = scalar_lea.sflag [#allocation3], 1
    %12 = vsyncpa %s11, 0
    %13 = vsyncpa [#allocation6], 0
    %s14 = scalar_lea.sflag [#allocation6], 1
    %15 = vsyncpa %s14, 0
    %16 = vsyncpa [#allocation4], 0
    %s17 = scalar_lea.sflag [#allocation4], 1
    %18 = vsyncpa %s17, 0
    %19 = vsyncpa [#allocation9], 0
    %s20 = scalar_lea.sflag [#allocation9], 1
    %21 = vsyncpa %s20, 0
    loop: start=0, step=1, limit=4
    $region2: #{tpu_custom_call.1} parent=1 // loop_pre_header
      _
    $region3: #{tpu_custom_call.1} parent=1 // loop_header
      %s23 = sphi 0, %s27
      %p24 = scmp.ge.s32.totalorder %s23, 4
      %s30 = sphi 0, %s42
      %s31 = sphi 0, %s38
      %s32 = sphi 0, %s30
      %s33 = sphi 0, %s31
      %s34 = sphi 0, %s32
      %s35 = sphi 0, %s33
      %s45 = sphi 0, %s47
      %s48 = sphi 0, %s45
      %s49 = sphi 0, %s48
      %s65 = sphi 0, %s49
      %s73 = sphi 0, %s75
      %s76 = sphi 0, %s73
      %s77 = sphi 0, %s76
      %s93 = sphi 0, %s77
      %s101 = sphi 0, %s103
      %s104 = sphi 0, %s101
      %s105 = sphi 0, %s104
      %s121 = sphi 0, %s105
      %s127 = sphi 0, %s129
      %s130 = sphi 0, %s127
      %s131 = sphi 0, %s130
      %s147 = sphi 0, %s131
      %s155 = sphi 0, %s157
      %s158 = sphi 0, %s155
      %s159 = sphi 0, %s158
      %s175 = sphi 0, %s159
    $region4: #{tpu_custom_call.1} parent=1 // loop_header_branch
      %26 = sbr.rel (%p24) target = $region8
    $region5: #{tpu_custom_call.1} parent=1 // loop_body
      %s28 = ssub.s32 %s23, 1
      %s29 = ssub.s32 %s23, 2
      %s36 = sadd.s32 1, %s31
      %p37 = scmp.ge.s32.totalorder %s36, 1
      %s38 = scalar_select %p37, 0, %s36
      %s39 = sadd.s32 1, %s30
      %s40 = scalar_select %p37, %s39, %s30
      %p41 = scmp.ge.s32.totalorder %s40, 2
      %s42 = scalar_select %p41, 0, %s40
      %s43 = ssub.s32 %s30, %s42
      %p44 = scmp.eq.s32.totalorder %s43, 0
      %s46 = sadd.s32 %s45, 1
      %s47 = scalar_select %p44, %s45, %s46
      %p50 = pneg %p44
      %p51 = scmp.eq.s32.totalorder %s23, 1
      %p52 = por %p50, %p51
      %p53 = scmp.ne.s32.totalorder %s45, %s48
      %p54 = scmp.eq.s32.totalorder %s23, 0
      %p55 = por %p53, %p54
      %p56 = scmp.ne.s32.totalorder %s45, %s48
      %p57 = scmp.eq.s32.totalorder %s28, 1
      %p58 = por %p56, %p57
      %p59 = scmp.ne.s32.totalorder %s48, %s49
      %p60 = scmp.eq.s32.totalorder %s28, 0
      %p61 = por %p59, %p60
      %p62 = scmp.ne.s32.totalorder %s48, %s49
      %p63 = scmp.eq.s32.totalorder %s29, 1
      %p64 = por %p62, %p63
      %p66 = scmp.ne.s32.totalorder %s49, %s65
      %p67 = scmp.eq.s32.totalorder %s29, 0
      %p68 = por %p66, %p67
      %s69 = ssub.s32 %s30, %s42
      %s70 = ssub.s32 %s31, %s38
      %s71 = sor.u32 %s69, %s70
      %p72 = scmp.eq.s32.totalorder %s71, 0
      %s74 = sadd.s32 %s73, 1
      %s75 = scalar_select %p72, %s73, %s74
      %p78 = pneg %p72
      %p79 = scmp.eq.s32.totalorder %s23, 1
      %p80 = por %p78, %p79
      %p81 = scmp.ne.s32.totalorder %s73, %s76
      %p82 = scmp.eq.s32.totalorder %s23, 0
      %p83 = por %p81, %p82
      %p84 = scmp.ne.s32.totalorder %s73, %s76
      %p85 = scmp.eq.s32.totalorder %s28, 1
      %p86 = por %p84, %p85
      %p87 = scmp.ne.s32.totalorder %s76, %s77
      %p88 = scmp.eq.s32.totalorder %s28, 0
      %p89 = por %p87, %p88
      %p90 = scmp.ne.s32.totalorder %s76, %s77
      %p91 = scmp.eq.s32.totalorder %s29, 1
      %p92 = por %p90, %p91
      %p94 = scmp.ne.s32.totalorder %s77, %s93
      %p95 = scmp.eq.s32.totalorder %s29, 0
      %p96 = por %p94, %p95
      %s97 = ssub.s32 %s30, %s42
      %s98 = ssub.s32 %s31, %s38
      %s99 = sor.u32 %s97, %s98
      %p100 = scmp.eq.s32.totalorder %s99, 0
      %s102 = sadd.s32 %s101, 1
      %s103 = scalar_select %p100, %s101, %s102
      %p106 = pneg %p100
      %p107 = scmp.eq.s32.totalorder %s23, 1
      %p108 = por %p106, %p107
      %p109 = scmp.ne.s32.totalorder %s101, %s104
      %p110 = scmp.eq.s32.totalorder %s23, 0
      %p111 = por %p109, %p110
      %p112 = scmp.ne.s32.totalorder %s101, %s104
      %p113 = scmp.eq.s32.totalorder %s28, 1
      %p114 = por %p112, %p113
      %p115 = scmp.ne.s32.totalorder %s104, %s105
      %p116 = scmp.eq.s32.totalorder %s28, 0
      %p117 = por %p115, %p116
      %p118 = scmp.ne.s32.totalorder %s104, %s105
      %p119 = scmp.eq.s32.totalorder %s29, 1
      %p120 = por %p118, %p119
      %p122 = scmp.ne.s32.totalorder %s105, %s121
      %p123 = scmp.eq.s32.totalorder %s29, 0
      %p124 = por %p122, %p123
      %s125 = ssub.s32 %s30, %s42
      %p126 = scmp.eq.s32.totalorder %s125, 0
      %s128 = sadd.s32 %s127, 1
      %s129 = scalar_select %p126, %s127, %s128
      %p132 = pneg %p126
      %p133 = scmp.eq.s32.totalorder %s23, 1
      %p134 = por %p132, %p133
      %p135 = scmp.ne.s32.totalorder %s127, %s130
      %p136 = scmp.eq.s32.totalorder %s23, 0
      %p137 = por %p135, %p136
      %p138 = scmp.ne.s32.totalorder %s127, %s130
      %p139 = scmp.eq.s32.totalorder %s28, 1
      %p140 = por %p138, %p139
      %p141 = scmp.ne.s32.totalorder %s130, %s131
      %p142 = scmp.eq.s32.totalorder %s28, 0
      %p143 = por %p141, %p142
      %p144 = scmp.ne.s32.totalorder %s130, %s131
      %p145 = scmp.eq.s32.totalorder %s29, 1
      %p146 = por %p144, %p145
      %p148 = scmp.ne.s32.totalorder %s131, %s147
      %p149 = scmp.eq.s32.totalorder %s29, 0
      %p150 = por %p148, %p149
      %s151 = ssub.s32 %s30, %s42
      %s152 = ssub.s32 %s31, %s38
      %s153 = sor.u32 %s151, %s152
      %p154 = scmp.eq.s32.totalorder %s153, 0
      %s156 = sadd.s32 %s155, 1
      %s157 = scalar_select %p154, %s155, %s156
      %p160 = pneg %p154
      %p161 = scmp.eq.s32.totalorder %s23, 1
      %p162 = por %p160, %p161
      %p163 = scmp.ne.s32.totalorder %s155, %s158
      %p164 = scmp.eq.s32.totalorder %s23, 0
      %p165 = por %p163, %p164
      %p166 = scmp.ne.s32.totalorder %s155, %s158
      %p167 = scmp.eq.s32.totalorder %s28, 1
      %p168 = por %p166, %p167
      %p169 = scmp.ne.s32.totalorder %s158, %s159
      %p170 = scmp.eq.s32.totalorder %s28, 0
      %p171 = por %p169, %p170
      %p172 = scmp.ne.s32.totalorder %s158, %s159
      %p173 = scmp.eq.s32.totalorder %s29, 1
      %p174 = por %p172, %p173
      %p176 = scmp.ne.s32.totalorder %s159, %s175
      %p177 = scmp.eq.s32.totalorder %s29, 0
      %p178 = por %p176, %p177
      %p179 = scmp.le.s32.totalorder 1, %s23
      %p180 = scmp.lt.s32.totalorder %s23, 3
      %p181 = pnand %p179, %p180
      %p182 = pneg %p181
      // Predicated region
      $region9: #{tpu_custom_call.1} parent=5 // pred_check
        _
      $region10: #{tpu_custom_call.1} parent=5 // pred_check_branch
        %184 = sbr.rel (%p181) target = $region12
      $region11: #{tpu_custom_call.1} parent=5 // pred_region
        %s185 = ssub.s32 %s23, 1
      $region12: #{tpu_custom_call.1} parent=5 // pred_fallthru
        _
      %p186 = scmp.lt.s32.totalorder %s23, 2
      // Predicated region
      $region13: #{tpu_custom_call.1} parent=5 // pred_check
        %p187 = pneg %p186
      $region14: #{tpu_custom_call.1} parent=5 // pred_check_branch
        %189 = sbr.rel (%p187) target = $region16
      $region15: #{tpu_custom_call.1} parent=5 // pred_region
        // Predicated region
        $region17: #{tpu_custom_call.1} parent=15 // pred_check
          %p190 = pneg %p55
        $region18: #{tpu_custom_call.1} parent=15 // pred_check_branch
          %192 = sbr.rel (%p190) target = $region20
        $region19: #{tpu_custom_call.1} parent=15 // pred_region
          %s193 = sand.u32 %s45, 1
          %s194 = scalar_lea.sflag [#allocation3], %s193
          %s195 = sand.u32 %s45, 1
          %s196 = smul.addr %s195, 8
          %s197 = scalar_lea.vmem [#allocation2], %s196
          %s198 = smul.u32 4, %s30
          %s200 = ssub.s32 128, 128
          %201 = vsyncadd %s194, %s200
          %s202 = smul.addr %s198, 2
          %s203 = smul.addr %s202, 16
          %s204 = scalar_lea.hbm %s0, %s203
          %s205 = sshll.u32 %s197, 4
          %s206 = int_to_ptr.vmem [resolvable:$true] %s205
          %211 = dma.hbm_to_vmem [thread:$0]  %s204, 128, %s206, %s194, 32, 32, 2
        $region20: #{tpu_custom_call.1} parent=15 // pred_fallthru
          _
        // Predicated region
        $region21: #{tpu_custom_call.1} parent=15 // pred_check
          %p212 = pneg %p83
        $region22: #{tpu_custom_call.1} parent=15 // pred_check_branch
          %214 = sbr.rel (%p212) target = $region24
        $region23: #{tpu_custom_call.1} parent=15 // pred_region
          %s215 = smul.u32 4, %s30
          %s216 = smul.u32 32, %s31
          %p217 = scmp.lt.s32.totalorder %s215, 7
          %s218 = scalar_select %p217, %s215, 7
          %p219 = scmp.lt.s32.totalorder %s216, 31
          %s220 = scalar_select %p219, %s216, 31
          %s221 = smul.addr %s218, 32
          %s222 = sadd.s32 %s220, %s221
          %s223 = smul.addr %s222, 8
          %s224 = scalar_lea.vmem %s1, %s223
          %s225 = smul.u32 4, %s30
          %s226 = smul.u32 32, %s31
        $region24: #{tpu_custom_call.1} parent=15 // pred_fallthru
          _
        // Predicated region
        $region25: #{tpu_custom_call.1} parent=15 // pred_check
          %p227 = pneg %p111
        $region26: #{tpu_custom_call.1} parent=15 // pred_check_branch
          %229 = sbr.rel (%p227) target = $region28
        $region27: #{tpu_custom_call.1} parent=15 // pred_region
          %s230 = sand.u32 %s101, 1
          %s231 = scalar_lea.sflag [#allocation6], %s230
          %s232 = sand.u32 %s101, 1
          %s233 = smul.addr %s232, 2048
          %s234 = scalar_lea.vmem [#allocation5], %s233
          %s235 = smul.u32 4, %s30
          %s236 = smul.u32 32, %s31
          %s238 = ssub.s32 32768, 32768
          %239 = vsyncadd %s231, %s238
          %s240 = smul.addr %s236, 2
          %s241 = smul.addr %s235, 64
          %s242 = sadd.s32 %s240, %s241
          %s243 = smul.addr %s242, 128
          %s244 = scalar_lea.hbm %s2, %s243
          %s245 = sshll.u32 %s234, 4
          %s246 = int_to_ptr.vmem [resolvable:$true] %s245
          %251 = dma.hbm_to_vmem [thread:$0]  %s244, 32768, %s246, %s231, 256, 256, 16
        $region28: #{tpu_custom_call.1} parent=15 // pred_fallthru
          _
      $region16: #{tpu_custom_call.1} parent=5 // pred_fallthru
        _
      %p252 = scmp.le.s32.totalorder 1, %s23
      %p253 = scmp.lt.s32.totalorder %s23, 3
      %p254 = pnand %p252, %p253
      %p255 = pneg %p254
      // Predicated region
      $region29: #{tpu_custom_call.1} parent=5 // pred_check
        _
      $region30: #{tpu_custom_call.1} parent=5 // pred_check_branch
        %257 = sbr.rel (%p254) target = $region32
      $region31: #{tpu_custom_call.1} parent=5 // pred_region
        %s258 = ssub.s32 %s23, 1
        %s259 = sand.u32 %s48, 1
        %s260 = scalar_lea.sflag [#allocation3], %s259
        %s261 = sand.u32 %s48, 1
        %s262 = smul.addr %s261, 8
        %s263 = scalar_lea.vmem [#allocation2], %s262
        // Predicated region
        $region33: #{tpu_custom_call.1} parent=31 // pred_check
          %p264 = pneg %p61
        $region34: #{tpu_custom_call.1} parent=31 // pred_check_branch
          %266 = sbr.rel (%p264) target = $region36
        $region35: #{tpu_custom_call.1} parent=31 // pred_region
          %267 = dma.done %s260, 128
        $region36: #{tpu_custom_call.1} parent=31 // pred_fallthru
          _
        %s268 = sand.u32 %s104, 1
        %s269 = scalar_lea.sflag [#allocation6], %s268
        %s270 = sand.u32 %s104, 1
        %s271 = smul.addr %s270, 2048
        %s272 = scalar_lea.vmem [#allocation5], %s271
        // Predicated region
        $region37: #{tpu_custom_call.1} parent=31 // pred_check
          %p273 = pneg %p117
        $region38: #{tpu_custom_call.1} parent=31 // pred_check_branch
          %275 = sbr.rel (%p273) target = $region40
        $region39: #{tpu_custom_call.1} parent=31 // pred_region
          %276 = dma.done %s269, 32768
        $region40: #{tpu_custom_call.1} parent=31 // pred_fallthru
          _
        %s277 = sand.u32 %s48, 1
        %s278 = scalar_lea.sflag [#allocation3], %s277
        %s279 = sand.u32 %s48, 1
        %s280 = smul.addr %s279, 8
        %s281 = scalar_lea.vmem [#allocation2], %s280
        %p282 = pneg %p61
        %p283 = pneg %p58
        %s284 = smul.u32 4, %s32
        %s285 = smul.u32 32, %s33
        %p286 = scmp.lt.s32.totalorder %s284, 7
        %s287 = scalar_select %p286, %s284, 7
        %p288 = scmp.lt.s32.totalorder %s285, 31
        %s289 = scalar_select %p288, %s285, 31
        %s290 = smul.addr %s287, 32
        %s291 = sadd.s32 %s289, %s290
        %s292 = smul.addr %s291, 8
        %s293 = scalar_lea.vmem %s1, %s292
        %p294 = pneg %p89
        %p295 = pneg %p86
        %s296 = sand.u32 %s104, 1
        %s297 = scalar_lea.sflag [#allocation6], %s296
        %s298 = sand.u32 %s104, 1
        %s299 = smul.addr %s298, 2048
        %s300 = scalar_lea.vmem [#allocation5], %s299
        %p301 = pneg %p117
        %p302 = pneg %p114
        %p303 = pneg %p143
        %p304 = pneg %p140
        %s305 = sand.u32 %s130, 1
        %s306 = scalar_lea.sflag [#allocation4], %s305
        %s307 = sand.u32 %s130, 1
        %s308 = smul.addr %s307, 8
        %s309 = scalar_lea.vmem [#allocation7], %s308
        %p310 = pneg %p171
        %p311 = pneg %p168
        %s312 = sand.u32 %s158, 1
        %s313 = scalar_lea.sflag [#allocation9], %s312
        %s314 = sand.u32 %s158, 1
        %s315 = smul.addr %s314, 2048
        %s316 = scalar_lea.vmem [#allocation8], %s315
        %s317 = smul.u32 4, %s32
        %s318 = smul.u32 4, %s32
        %s319 = smul.u32 32, %s33
        %p320 = scmp.lt.s32.totalorder %s318, 7
        %s321 = scalar_select %p320, %s318, 7
        %p322 = scmp.lt.s32.totalorder %s319, 31
        %s323 = scalar_select %p322, %s319, 31
        %s324 = smul.addr %s321, 32
        %s325 = sadd.s32 %s323, %s324
        %s326 = smul.addr %s325, 8
        %s327 = scalar_lea.vmem %s1, %s326
        %s328 = smul.u32 4, %s32
        %s329 = smul.u32 32, %s33
        %s330 = smul.u32 4, %s32
        %s331 = smul.u32 32, %s33
        %s332 = smul.u32 4, %s32
        %s333 = smul.u32 4, %s32
        %s334 = smul.u32 32, %s33
        %v335 = vld [vmem:[%s263] sm:$0x3]
        %v336 = vld [vmem:[%s263 + $0x2] sm:$0x3]
        %v337 = vld [vmem:[%s263 + $0x4] sm:$0x3]
        %v338 = vld [vmem:[%s263 + $0x6] sm:$0x3]
        %v339 = vmax.f32 %v335, 0.0
        %v340 = vmax.f32 %v336, 0.0
        %v341 = vmax.f32 %v337, 0.0
        %v342 = vmax.f32 %v338, 0.0
        %v343 = vlaneseq
        %vm344 = vcmp.ge.s32.totalorder %v343, 0
        %vm345 = vcmp.lt.s32.totalorder %v343, 256
        %vm346 = vmand %vm344, %vm345
        %347 = vst.msk [vmem:[%s309] sm:$0x3] %vm346, %v339
        %348 = vst.msk [vmem:[%s309 + $0x2] sm:$0x3] %vm346, %v340
        %349 = vst.msk [vmem:[%s309 + $0x4] sm:$0x3] %vm346, %v341
        %350 = vst.msk [vmem:[%s309 + $0x6] sm:$0x3] %vm346, %v342
        %v351 = vld [vmem:[%s327] sm:$0xff]
        %v352 = vld [vmem:[%s327 + $0x8] sm:$0xff]
        %v353 = vld [vmem:[%s327 + $0x10] sm:$0xff]
        %v354 = vld [vmem:[%s327 + $0x18] sm:$0xff]
        %v355 = vld [vmem:[%s327 + $0x20] sm:$0xff]
        %v356 = vld [vmem:[%s327 + $0x28] sm:$0xff]
        %v357 = vld [vmem:[%s327 + $0x30] sm:$0xff]
        %v358 = vld [vmem:[%s327 + $0x38] sm:$0xff]
        %v359 = vld [vmem:[%s327 + $0x40] sm:$0xff]
        %v360 = vld [vmem:[%s327 + $0x48] sm:$0xff]
        %v361 = vld [vmem:[%s327 + $0x50] sm:$0xff]
        %v362 = vld [vmem:[%s327 + $0x58] sm:$0xff]
        %v363 = vld [vmem:[%s327 + $0x60] sm:$0xff]
        %v364 = vld [vmem:[%s327 + $0x68] sm:$0xff]
        %v365 = vld [vmem:[%s327 + $0x70] sm:$0xff]
        %v366 = vld [vmem:[%s327 + $0x78] sm:$0xff]
        %v367 = vld [vmem:[%s327 + $0x80] sm:$0xff]
        %v368 = vld [vmem:[%s327 + $0x88] sm:$0xff]
        %v369 = vld [vmem:[%s327 + $0x90] sm:$0xff]
        %v370 = vld [vmem:[%s327 + $0x98] sm:$0xff]
        %v371 = vld [vmem:[%s327 + $0xa0] sm:$0xff]
        %v372 = vld [vmem:[%s327 + $0xa8] sm:$0xff]
        %v373 = vld [vmem:[%s327 + $0xb0] sm:$0xff]
        %v374 = vld [vmem:[%s327 + $0xb8] sm:$0xff]
        %v375 = vld [vmem:[%s327 + $0xc0] sm:$0xff]
        %v376 = vld [vmem:[%s327 + $0xc8] sm:$0xff]
        %v377 = vld [vmem:[%s327 + $0xd0] sm:$0xff]
        %v378 = vld [vmem:[%s327 + $0xd8] sm:$0xff]
        %v379 = vld [vmem:[%s327 + $0xe0] sm:$0xff]
        %v380 = vld [vmem:[%s327 + $0xe8] sm:$0xff]
        %v381 = vld [vmem:[%s327 + $0xf0] sm:$0xff]
        %v382 = vld [vmem:[%s327 + $0xf8] sm:$0xff]
        %v383 = vld [vmem:[%s327 + $0x100] sm:$0xff]
        %v384 = vld [vmem:[%s327 + $0x108] sm:$0xff]
        %v385 = vld [vmem:[%s327 + $0x110] sm:$0xff]
        %v386 = vld [vmem:[%s327 + $0x118] sm:$0xff]
        %v387 = vld [vmem:[%s327 + $0x120] sm:$0xff]
        %v388 = vld [vmem:[%s327 + $0x128] sm:$0xff]
        %v389 = vld [vmem:[%s327 + $0x130] sm:$0xff]
        %v390 = vld [vmem:[%s327 + $0x138] sm:$0xff]
        %v391 = vld [vmem:[%s327 + $0x140] sm:$0xff]
        %v392 = vld [vmem:[%s327 + $0x148] sm:$0xff]
        %v393 = vld [vmem:[%s327 + $0x150] sm:$0xff]
        %v394 = vld [vmem:[%s327 + $0x158] sm:$0xff]
        %v395 = vld [vmem:[%s327 + $0x160] sm:$0xff]
        %v396 = vld [vmem:[%s327 + $0x168] sm:$0xff]
        %v397 = vld [vmem:[%s327 + $0x170] sm:$0xff]
        %v398 = vld [vmem:[%s327 + $0x178] sm:$0xff]
        %v399 = vld [vmem:[%s327 + $0x180] sm:$0xff]
        %v400 = vld [vmem:[%s327 + $0x188] sm:$0xff]
        %v401 = vld [vmem:[%s327 + $0x190] sm:$0xff]
        %v402 = vld [vmem:[%s327 + $0x198] sm:$0xff]
        %v403 = vld [vmem:[%s327 + $0x1a0] sm:$0xff]
        %v404 = vld [vmem:[%s327 + $0x1a8] sm:$0xff]
        %v405 = vld [vmem:[%s327 + $0x1b0] sm:$0xff]
        %v406 = vld [vmem:[%s327 + $0x1b8] sm:$0xff]
        %v407 = vld [vmem:[%s327 + $0x1c0] sm:$0xff]
        %v408 = vld [vmem:[%s327 + $0x1c8] sm:$0xff]
        %v409 = vld [vmem:[%s327 + $0x1d0] sm:$0xff]
        %v410 = vld [vmem:[%s327 + $0x1d8] sm:$0xff]
        %v411 = vld [vmem:[%s327 + $0x1e0] sm:$0xff]
        %v412 = vld [vmem:[%s327 + $0x1e8] sm:$0xff]
        %v413 = vld [vmem:[%s327 + $0x1f0] sm:$0xff]
        %v414 = vld [vmem:[%s327 + $0x1f8] sm:$0xff]
        %v415 = vld [vmem:[%s327 + $0x200] sm:$0xff]
        %v416 = vld [vmem:[%s327 + $0x208] sm:$0xff]
        %v417 = vld [vmem:[%s327 + $0x210] sm:$0xff]
        %v418 = vld [vmem:[%s327 + $0x218] sm:$0xff]
        %v419 = vld [vmem:[%s327 + $0x220] sm:$0xff]
        %v420 = vld [vmem:[%s327 + $0x228] sm:$0xff]
        %v421 = vld [vmem:[%s327 + $0x230] sm:$0xff]
        %v422 = vld [vmem:[%s327 + $0x238] sm:$0xff]
        %v423 = vld [vmem:[%s327 + $0x240] sm:$0xff]
        %v424 = vld [vmem:[%s327 + $0x248] sm:$0xff]
        %v425 = vld [vmem:[%s327 + $0x250] sm:$0xff]
        %v426 = vld [vmem:[%s327 + $0x258] sm:$0xff]
        %v427 = vld [vmem:[%s327 + $0x260] sm:$0xff]
        %v428 = vld [vmem:[%s327 + $0x268] sm:$0xff]
        %v429 = vld [vmem:[%s327 + $0x270] sm:$0xff]
        %v430 = vld [vmem:[%s327 + $0x278] sm:$0xff]
        %v431 = vld [vmem:[%s327 + $0x280] sm:$0xff]
        %v432 = vld [vmem:[%s327 + $0x288] sm:$0xff]
        %v433 = vld [vmem:[%s327 + $0x290] sm:$0xff]
        %v434 = vld [vmem:[%s327 + $0x298] sm:$0xff]
        %v435 = vld [vmem:[%s327 + $0x2a0] sm:$0xff]
        %v436 = vld [vmem:[%s327 + $0x2a8] sm:$0xff]
        %v437 = vld [vmem:[%s327 + $0x2b0] sm:$0xff]
        %v438 = vld [vmem:[%s327 + $0x2b8] sm:$0xff]
        %v439 = vld [vmem:[%s327 + $0x2c0] sm:$0xff]
        %v440 = vld [vmem:[%s327 + $0x2c8] sm:$0xff]
        %v441 = vld [vmem:[%s327 + $0x2d0] sm:$0xff]
        %v442 = vld [vmem:[%s327 + $0x2d8] sm:$0xff]
        %v443 = vld [vmem:[%s327 + $0x2e0] sm:$0xff]
        %v444 = vld [vmem:[%s327 + $0x2e8] sm:$0xff]
        %v445 = vld [vmem:[%s327 + $0x2f0] sm:$0xff]
        %v446 = vld [vmem:[%s327 + $0x2f8] sm:$0xff]
        %v447 = vld [vmem:[%s327 + $0x300] sm:$0xff]
        %v448 = vld [vmem:[%s327 + $0x308] sm:$0xff]
        %v449 = vld [vmem:[%s327 + $0x310] sm:$0xff]
        %v450 = vld [vmem:[%s327 + $0x318] sm:$0xff]
        %v451 = vld [vmem:[%s327 + $0x320] sm:$0xff]
        %v452 = vld [vmem:[%s327 + $0x328] sm:$0xff]
        %v453 = vld [vmem:[%s327 + $0x330] sm:$0xff]
        %v454 = vld [vmem:[%s327 + $0x338] sm:$0xff]
        %v455 = vld [vmem:[%s327 + $0x340] sm:$0xff]
        %v456 = vld [vmem:[%s327 + $0x348] sm:$0xff]
        %v457 = vld [vmem:[%s327 + $0x350] sm:$0xff]
        %v458 = vld [vmem:[%s327 + $0x358] sm:$0xff]
        %v459 = vld [vmem:[%s327 + $0x360] sm:$0xff]
        %v460 = vld [vmem:[%s327 + $0x368] sm:$0xff]
        %v461 = vld [vmem:[%s327 + $0x370] sm:$0xff]
        %v462 = vld [vmem:[%s327 + $0x378] sm:$0xff]
        %v463 = vld [vmem:[%s327 + $0x380] sm:$0xff]
        %v464 = vld [vmem:[%s327 + $0x388] sm:$0xff]
        %v465 = vld [vmem:[%s327 + $0x390] sm:$0xff]
        %v466 = vld [vmem:[%s327 + $0x398] sm:$0xff]
        %v467 = vld [vmem:[%s327 + $0x3a0] sm:$0xff]
        %v468 = vld [vmem:[%s327 + $0x3a8] sm:$0xff]
        %v469 = vld [vmem:[%s327 + $0x3b0] sm:$0xff]
        %v470 = vld [vmem:[%s327 + $0x3b8] sm:$0xff]
        %v471 = vld [vmem:[%s327 + $0x3c0] sm:$0xff]
        %v472 = vld [vmem:[%s327 + $0x3c8] sm:$0xff]
        %v473 = vld [vmem:[%s327 + $0x3d0] sm:$0xff]
        %v474 = vld [vmem:[%s327 + $0x3d8] sm:$0xff]
        %v475 = vld [vmem:[%s327 + $0x3e0] sm:$0xff]
        %v476 = vld [vmem:[%s327 + $0x3e8] sm:$0xff]
        %v477 = vld [vmem:[%s327 + $0x3f0] sm:$0xff]
        %v478 = vld [vmem:[%s327 + $0x3f8] sm:$0xff]
        %vm479 = vcmp.gt.f32.partialorder %v351, 0.0
        %vm480 = vcmp.gt.f32.partialorder %v352, 0.0
        %vm481 = vcmp.gt.f32.partialorder %v353, 0.0
        %vm482 = vcmp.gt.f32.partialorder %v354, 0.0
        %vm483 = vcmp.gt.f32.partialorder %v355, 0.0
        %vm484 = vcmp.gt.f32.partialorder %v356, 0.0
        %vm485 = vcmp.gt.f32.partialorder %v357, 0.0
        %vm486 = vcmp.gt.f32.partialorder %v358, 0.0
        %vm487 = vcmp.gt.f32.partialorder %v359, 0.0
        %vm488 = vcmp.gt.f32.partialorder %v360, 0.0
        %vm489 = vcmp.gt.f32.partialorder %v361, 0.0
        %vm490 = vcmp.gt.f32.partialorder %v362, 0.0
        %vm491 = vcmp.gt.f32.partialorder %v363, 0.0
        %vm492 = vcmp.gt.f32.partialorder %v364, 0.0
        %vm493 = vcmp.gt.f32.partialorder %v365, 0.0
        %vm494 = vcmp.gt.f32.partialorder %v366, 0.0
        %vm495 = vcmp.gt.f32.partialorder %v367, 0.0
        %vm496 = vcmp.gt.f32.partialorder %v368, 0.0
        %vm497 = vcmp.gt.f32.partialorder %v369, 0.0
        %vm498 = vcmp.gt.f32.partialorder %v370, 0.0
        %vm499 = vcmp.gt.f32.partialorder %v371, 0.0
        %vm500 = vcmp.gt.f32.partialorder %v372, 0.0
        %vm501 = vcmp.gt.f32.partialorder %v373, 0.0
        %vm502 = vcmp.gt.f32.partialorder %v374, 0.0
        %vm503 = vcmp.gt.f32.partialorder %v375, 0.0
        %vm504 = vcmp.gt.f32.partialorder %v376, 0.0
        %vm505 = vcmp.gt.f32.partialorder %v377, 0.0
        %vm506 = vcmp.gt.f32.partialorder %v378, 0.0
        %vm507 = vcmp.gt.f32.partialorder %v379, 0.0
        %vm508 = vcmp.gt.f32.partialorder %v380, 0.0
        %vm509 = vcmp.gt.f32.partialorder %v381, 0.0
        %vm510 = vcmp.gt.f32.partialorder %v382, 0.0
        %vm511 = vcmp.gt.f32.partialorder %v383, 0.0
        %vm512 = vcmp.gt.f32.partialorder %v384, 0.0
        %vm513 = vcmp.gt.f32.partialorder %v385, 0.0
        %vm514 = vcmp.gt.f32.partialorder %v386, 0.0
        %vm515 = vcmp.gt.f32.partialorder %v387, 0.0
        %vm516 = vcmp.gt.f32.partialorder %v388, 0.0
        %vm517 = vcmp.gt.f32.partialorder %v389, 0.0
        %vm518 = vcmp.gt.f32.partialorder %v390, 0.0
        %vm519 = vcmp.gt.f32.partialorder %v391, 0.0
        %vm520 = vcmp.gt.f32.partialorder %v392, 0.0
        %vm521 = vcmp.gt.f32.partialorder %v393, 0.0
        %vm522 = vcmp.gt.f32.partialorder %v394, 0.0
        %vm523 = vcmp.gt.f32.partialorder %v395, 0.0
        %vm524 = vcmp.gt.f32.partialorder %v396, 0.0
        %vm525 = vcmp.gt.f32.partialorder %v397, 0.0
        %vm526 = vcmp.gt.f32.partialorder %v398, 0.0
        %vm527 = vcmp.gt.f32.partialorder %v399, 0.0
        %vm528 = vcmp.gt.f32.partialorder %v400, 0.0
        %vm529 = vcmp.gt.f32.partialorder %v401, 0.0
        %vm530 = vcmp.gt.f32.partialorder %v402, 0.0
        %vm531 = vcmp.gt.f32.partialorder %v403, 0.0
        %vm532 = vcmp.gt.f32.partialorder %v404, 0.0
        %vm533 = vcmp.gt.f32.partialorder %v405, 0.0
        %vm534 = vcmp.gt.f32.partialorder %v406, 0.0
        %vm535 = vcmp.gt.f32.partialorder %v407, 0.0
        %vm536 = vcmp.gt.f32.partialorder %v408, 0.0
        %vm537 = vcmp.gt.f32.partialorder %v409, 0.0
        %vm538 = vcmp.gt.f32.partialorder %v410, 0.0
        %vm539 = vcmp.gt.f32.partialorder %v411, 0.0
        %vm540 = vcmp.gt.f32.partialorder %v412, 0.0
        %vm541 = vcmp.gt.f32.partialorder %v413, 0.0
        %vm542 = vcmp.gt.f32.partialorder %v414, 0.0
        %vm543 = vcmp.gt.f32.partialorder %v415, 0.0
        %vm544 = vcmp.gt.f32.partialorder %v416, 0.0
        %vm545 = vcmp.gt.f32.partialorder %v417, 0.0
        %vm546 = vcmp.gt.f32.partialorder %v418, 0.0
        %vm547 = vcmp.gt.f32.partialorder %v419, 0.0
        %vm548 = vcmp.gt.f32.partialorder %v420, 0.0
        %vm549 = vcmp.gt.f32.partialorder %v421, 0.0
        %vm550 = vcmp.gt.f32.partialorder %v422, 0.0
        %vm551 = vcmp.gt.f32.partialorder %v423, 0.0
        %vm552 = vcmp.gt.f32.partialorder %v424, 0.0
        %vm553 = vcmp.gt.f32.partialorder %v425, 0.0
        %vm554 = vcmp.gt.f32.partialorder %v426, 0.0
        %vm555 = vcmp.gt.f32.partialorder %v427, 0.0
        %vm556 = vcmp.gt.f32.partialorder %v428, 0.0
        %vm557 = vcmp.gt.f32.partialorder %v429, 0.0
        %vm558 = vcmp.gt.f32.partialorder %v430, 0.0
        %vm559 = vcmp.gt.f32.partialorder %v431, 0.0
        %vm560 = vcmp.gt.f32.partialorder %v432, 0.0
        %vm561 = vcmp.gt.f32.partialorder %v433, 0.0
        %vm562 = vcmp.gt.f32.partialorder %v434, 0.0
        %vm563 = vcmp.gt.f32.partialorder %v435, 0.0
        %vm564 = vcmp.gt.f32.partialorder %v436, 0.0
        %vm565 = vcmp.gt.f32.partialorder %v437, 0.0
        %vm566 = vcmp.gt.f32.partialorder %v438, 0.0
        %vm567 = vcmp.gt.f32.partialorder %v439, 0.0
        %vm568 = vcmp.gt.f32.partialorder %v440, 0.0
        %vm569 = vcmp.gt.f32.partialorder %v441, 0.0
        %vm570 = vcmp.gt.f32.partialorder %v442, 0.0
        %vm571 = vcmp.gt.f32.partialorder %v443, 0.0
        %vm572 = vcmp.gt.f32.partialorder %v444, 0.0
        %vm573 = vcmp.gt.f32.partialorder %v445, 0.0
        %vm574 = vcmp.gt.f32.partialorder %v446, 0.0
        %vm575 = vcmp.gt.f32.partialorder %v447, 0.0
        %vm576 = vcmp.gt.f32.partialorder %v448, 0.0
        %vm577 = vcmp.gt.f32.partialorder %v449, 0.0
        %vm578 = vcmp.gt.f32.partialorder %v450, 0.0
        %vm579 = vcmp.gt.f32.partialorder %v451, 0.0
        %vm580 = vcmp.gt.f32.partialorder %v452, 0.0
        %vm581 = vcmp.gt.f32.partialorder %v453, 0.0
        %vm582 = vcmp.gt.f32.partialorder %v454, 0.0
        %vm583 = vcmp.gt.f32.partialorder %v455, 0.0
        %vm584 = vcmp.gt.f32.partialorder %v456, 0.0
        %vm585 = vcmp.gt.f32.partialorder %v457, 0.0
        %vm586 = vcmp.gt.f32.partialorder %v458, 0.0
        %vm587 = vcmp.gt.f32.partialorder %v459, 0.0
        %vm588 = vcmp.gt.f32.partialorder %v460, 0.0
        %vm589 = vcmp.gt.f32.partialorder %v461, 0.0
        %vm590 = vcmp.gt.f32.partialorder %v462, 0.0
        %vm591 = vcmp.gt.f32.partialorder %v463, 0.0
        %vm592 = vcmp.gt.f32.partialorder %v464, 0.0
        %vm593 = vcmp.gt.f32.partialorder %v465, 0.0
        %vm594 = vcmp.gt.f32.partialorder %v466, 0.0
        %vm595 = vcmp.gt.f32.partialorder %v467, 0.0
        %vm596 = vcmp.gt.f32.partialorder %v468, 0.0
        %vm597 = vcmp.gt.f32.partialorder %v469, 0.0
        %vm598 = vcmp.gt.f32.partialorder %v470, 0.0
        %vm599 = vcmp.gt.f32.partialorder %v471, 0.0
        %vm600 = vcmp.gt.f32.partialorder %v472, 0.0
        %vm601 = vcmp.gt.f32.partialorder %v473, 0.0
        %vm602 = vcmp.gt.f32.partialorder %v474, 0.0
        %vm603 = vcmp.gt.f32.partialorder %v475, 0.0
        %vm604 = vcmp.gt.f32.partialorder %v476, 0.0
        %vm605 = vcmp.gt.f32.partialorder %v477, 0.0
        %vm606 = vcmp.gt.f32.partialorder %v478, 0.0
        %vm607 = vcmp.gt.f32.partialorder %v335, 0.0
        %vm608 = vcmp.gt.f32.partialorder %v336, 0.0
        %vm609 = vcmp.gt.f32.partialorder %v337, 0.0
        %vm610 = vcmp.gt.f32.partialorder %v338, 0.0
        %v611 = vsel %vm479, 1, 0
        %v612 = vsel %vm480, 1, 0
        %v613 = vsel %vm481, 1, 0
        %v614 = vsel %vm482, 1, 0
        %v615 = vsel %vm483, 1, 0
        %v616 = vsel %vm484, 1, 0
        %v617 = vsel %vm485, 1, 0
        %v618 = vsel %vm486, 1, 0
        %v619 = vsel %vm487, 1, 0
        %v620 = vsel %vm488, 1, 0
        %v621 = vsel %vm489, 1, 0
        %v622 = vsel %vm490, 1, 0
        %v623 = vsel %vm491, 1, 0
        %v624 = vsel %vm492, 1, 0
        %v625 = vsel %vm493, 1, 0
        %v626 = vsel %vm494, 1, 0
        %v627 = vsel %vm495, 1, 0
        %v628 = vsel %vm496, 1, 0
        %v629 = vsel %vm497, 1, 0
        %v630 = vsel %vm498, 1, 0
        %v631 = vsel %vm499, 1, 0
        %v632 = vsel %vm500, 1, 0
        %v633 = vsel %vm501, 1, 0
        %v634 = vsel %vm502, 1, 0
        %v635 = vsel %vm503, 1, 0
        %v636 = vsel %vm504, 1, 0
        %v637 = vsel %vm505, 1, 0
        %v638 = vsel %vm506, 1, 0
        %v639 = vsel %vm507, 1, 0
        %v640 = vsel %vm508, 1, 0
        %v641 = vsel %vm509, 1, 0
        %v642 = vsel %vm510, 1, 0
        %v643 = vsel %vm511, 1, 0
        %v644 = vsel %vm512, 1, 0
        %v645 = vsel %vm513, 1, 0
        %v646 = vsel %vm514, 1, 0
        %v647 = vsel %vm515, 1, 0
        %v648 = vsel %vm516, 1, 0
        %v649 = vsel %vm517, 1, 0
        %v650 = vsel %vm518, 1, 0
        %v651 = vsel %vm519, 1, 0
        %v652 = vsel %vm520, 1, 0
        %v653 = vsel %vm521, 1, 0
        %v654 = vsel %vm522, 1, 0
        %v655 = vsel %vm523, 1, 0
        %v656 = vsel %vm524, 1, 0
        %v657 = vsel %vm525, 1, 0
        %v658 = vsel %vm526, 1, 0
        %v659 = vsel %vm527, 1, 0
        %v660 = vsel %vm528, 1, 0
        %v661 = vsel %vm529, 1, 0
        %v662 = vsel %vm530, 1, 0
        %v663 = vsel %vm531, 1, 0
        %v664 = vsel %vm532, 1, 0
        %v665 = vsel %vm533, 1, 0
        %v666 = vsel %vm534, 1, 0
        %v667 = vsel %vm535, 1, 0
        %v668 = vsel %vm536, 1, 0
        %v669 = vsel %vm537, 1, 0
        %v670 = vsel %vm538, 1, 0
        %v671 = vsel %vm539, 1, 0
        %v672 = vsel %vm540, 1, 0
        %v673 = vsel %vm541, 1, 0
        %v674 = vsel %vm542, 1, 0
        %v675 = vsel %vm543, 1, 0
        %v676 = vsel %vm544, 1, 0
        %v677 = vsel %vm545, 1, 0
        %v678 = vsel %vm546, 1, 0
        %v679 = vsel %vm547, 1, 0
        %v680 = vsel %vm548, 1, 0
        %v681 = vsel %vm549, 1, 0
        %v682 = vsel %vm550, 1, 0
        %v683 = vsel %vm551, 1, 0
        %v684 = vsel %vm552, 1, 0
        %v685 = vsel %vm553, 1, 0
        %v686 = vsel %vm554, 1, 0
        %v687 = vsel %vm555, 1, 0
        %v688 = vsel %vm556, 1, 0
        %v689 = vsel %vm557, 1, 0
        %v690 = vsel %vm558, 1, 0
        %v691 = vsel %vm559, 1, 0
        %v692 = vsel %vm560, 1, 0
        %v693 = vsel %vm561, 1, 0
        %v694 = vsel %vm562, 1, 0
        %v695 = vsel %vm563, 1, 0
        %v696 = vsel %vm564, 1, 0
        %v697 = vsel %vm565, 1, 0
        %v698 = vsel %vm566, 1, 0
        %v699 = vsel %vm567, 1, 0
        %v700 = vsel %vm568, 1, 0
        %v701 = vsel %vm569, 1, 0
        %v702 = vsel %vm570, 1, 0
        %v703 = vsel %vm571, 1, 0
        %v704 = vsel %vm572, 1, 0
        %v705 = vsel %vm573, 1, 0
        %v706 = vsel %vm574, 1, 0
        %v707 = vsel %vm575, 1, 0
        %v708 = vsel %vm576, 1, 0
        %v709 = vsel %vm577, 1, 0
        %v710 = vsel %vm578, 1, 0
        %v711 = vsel %vm579, 1, 0
        %v712 = vsel %vm580, 1, 0
        %v713 = vsel %vm581, 1, 0
        %v714 = vsel %vm582, 1, 0
        %v715 = vsel %vm583, 1, 0
        %v716 = vsel %vm584, 1, 0
        %v717 = vsel %vm585, 1, 0
        %v718 = vsel %vm586, 1, 0
        %v719 = vsel %vm587, 1, 0
        %v720 = vsel %vm588, 1, 0
        %v721 = vsel %vm589, 1, 0
        %v722 = vsel %vm590, 1, 0
        %v723 = vsel %vm591, 1, 0
        %v724 = vsel %vm592, 1, 0
        %v725 = vsel %vm593, 1, 0
        %v726 = vsel %vm594, 1, 0
        %v727 = vsel %vm595, 1, 0
        %v728 = vsel %vm596, 1, 0
        %v729 = vsel %vm597, 1, 0
        %v730 = vsel %vm598, 1, 0
        %v731 = vsel %vm599, 1, 0
        %v732 = vsel %vm600, 1, 0
        %v733 = vsel %vm601, 1, 0
        %v734 = vsel %vm602, 1, 0
        %v735 = vsel %vm603, 1, 0
        %v736 = vsel %vm604, 1, 0
        %v737 = vsel %vm605, 1, 0
        %v738 = vsel %vm606, 1, 0
        %739 = vset.pattern.permute.xlu0 0
        %740 = vperm.xlu0 %739, %v611
        %v741 = vpop.permute.xlu0 %740
        %742 = vset.pattern.permute.xlu0 0
        %743 = vperm.xlu0 %742, %v612
        %v744 = vpop.permute.xlu0 %743
        %745 = vset.pattern.permute.xlu0 0
        %746 = vperm.xlu0 %745, %v613
        %v747 = vpop.permute.xlu0 %746
        %748 = vset.pattern.permute.xlu0 0
        %749 = vperm.xlu0 %748, %v614
        %v750 = vpop.permute.xlu0 %749
        %751 = vset.pattern.permute.xlu0 0
        %752 = vperm.xlu0 %751, %v615
        %v753 = vpop.permute.xlu0 %752
        %754 = vset.pattern.permute.xlu0 0
        %755 = vperm.xlu0 %754, %v616
        %v756 = vpop.permute.xlu0 %755
        %757 = vset.pattern.permute.xlu0 0
        %758 = vperm.xlu0 %757, %v617
        %v759 = vpop.permute.xlu0 %758
        %760 = vset.pattern.permute.xlu0 0
        %761 = vperm.xlu0 %760, %v618
        %v762 = vpop.permute.xlu0 %761
        %763 = vset.pattern.permute.xlu0 0
        %764 = vperm.xlu0 %763, %v619
        %v765 = vpop.permute.xlu0 %764
        %766 = vset.pattern.permute.xlu0 0
        %767 = vperm.xlu0 %766, %v620
        %v768 = vpop.permute.xlu0 %767
        %769 = vset.pattern.permute.xlu0 0
        %770 = vperm.xlu0 %769, %v621
        %v771 = vpop.permute.xlu0 %770
        %772 = vset.pattern.permute.xlu0 0
        %773 = vperm.xlu0 %772, %v622
        %v774 = vpop.permute.xlu0 %773
        %775 = vset.pattern.permute.xlu0 0
        %776 = vperm.xlu0 %775, %v623
        %v777 = vpop.permute.xlu0 %776
        %778 = vset.pattern.permute.xlu0 0
        %779 = vperm.xlu0 %778, %v624
        %v780 = vpop.permute.xlu0 %779
        %781 = vset.pattern.permute.xlu0 0
        %782 = vperm.xlu0 %781, %v625
        %v783 = vpop.permute.xlu0 %782
        %784 = vset.pattern.permute.xlu0 0
        %785 = vperm.xlu0 %784, %v626
        %v786 = vpop.permute.xlu0 %785
        %787 = vset.pattern.permute.xlu0 0
        %788 = vperm.xlu0 %787, %v627
        %v789 = vpop.permute.xlu0 %788
        %790 = vset.pattern.permute.xlu0 0
        %791 = vperm.xlu0 %790, %v628
        %v792 = vpop.permute.xlu0 %791
        %793 = vset.pattern.permute.xlu0 0
        %794 = vperm.xlu0 %793, %v629
        %v795 = vpop.permute.xlu0 %794
        %796 = vset.pattern.permute.xlu0 0
        %797 = vperm.xlu0 %796, %v630
        %v798 = vpop.permute.xlu0 %797
        %799 = vset.pattern.permute.xlu0 0
        %800 = vperm.xlu0 %799, %v631
        %v801 = vpop.permute.xlu0 %800
        %802 = vset.pattern.permute.xlu0 0
        %803 = vperm.xlu0 %802, %v632
        %v804 = vpop.permute.xlu0 %803
        %805 = vset.pattern.permute.xlu0 0
        %806 = vperm.xlu0 %805, %v633
        %v807 = vpop.permute.xlu0 %806
        %808 = vset.pattern.permute.xlu0 0
        %809 = vperm.xlu0 %808, %v634
        %v810 = vpop.permute.xlu0 %809
        %811 = vset.pattern.permute.xlu0 0
        %812 = vperm.xlu0 %811, %v635
        %v813 = vpop.permute.xlu0 %812
        %814 = vset.pattern.permute.xlu0 0
        %815 = vperm.xlu0 %814, %v636
        %v816 = vpop.permute.xlu0 %815
        %817 = vset.pattern.permute.xlu0 0
        %818 = vperm.xlu0 %817, %v637
        %v819 = vpop.permute.xlu0 %818
        %820 = vset.pattern.permute.xlu0 0
        %821 = vperm.xlu0 %820, %v638
        %v822 = vpop.permute.xlu0 %821
        %823 = vset.pattern.permute.xlu0 0
        %824 = vperm.xlu0 %823, %v639
        %v825 = vpop.permute.xlu0 %824
        %826 = vset.pattern.permute.xlu0 0
        %827 = vperm.xlu0 %826, %v640
        %v828 = vpop.permute.xlu0 %827
        %829 = vset.pattern.permute.xlu0 0
        %830 = vperm.xlu0 %829, %v641
        %v831 = vpop.permute.xlu0 %830
        %832 = vset.pattern.permute.xlu0 0
        %833 = vperm.xlu0 %832, %v642
        %v834 = vpop.permute.xlu0 %833
        %835 = vset.pattern.permute.xlu0 0
        %836 = vperm.xlu0 %835, %v643
        %v837 = vpop.permute.xlu0 %836
        %838 = vset.pattern.permute.xlu0 0
        %839 = vperm.xlu0 %838, %v644
        %v840 = vpop.permute.xlu0 %839
        %841 = vset.pattern.permute.xlu0 0
        %842 = vperm.xlu0 %841, %v645
        %v843 = vpop.permute.xlu0 %842
        %844 = vset.pattern.permute.xlu0 0
        %845 = vperm.xlu0 %844, %v646
        %v846 = vpop.permute.xlu0 %845
        %847 = vset.pattern.permute.xlu0 0
        %848 = vperm.xlu0 %847, %v647
        %v849 = vpop.permute.xlu0 %848
        %850 = vset.pattern.permute.xlu0 0
        %851 = vperm.xlu0 %850, %v648
        %v852 = vpop.permute.xlu0 %851
        %853 = vset.pattern.permute.xlu0 0
        %854 = vperm.xlu0 %853, %v649
        %v855 = vpop.permute.xlu0 %854
        %856 = vset.pattern.permute.xlu0 0
        %857 = vperm.xlu0 %856, %v650
        %v858 = vpop.permute.xlu0 %857
        %859 = vset.pattern.permute.xlu0 0
        %860 = vperm.xlu0 %859, %v651
        %v861 = vpop.permute.xlu0 %860
        %862 = vset.pattern.permute.xlu0 0
        %863 = vperm.xlu0 %862, %v652
        %v864 = vpop.permute.xlu0 %863
        %865 = vset.pattern.permute.xlu0 0
        %866 = vperm.xlu0 %865, %v653
        %v867 = vpop.permute.xlu0 %866
        %868 = vset.pattern.permute.xlu0 0
        %869 = vperm.xlu0 %868, %v654
        %v870 = vpop.permute.xlu0 %869
        %871 = vset.pattern.permute.xlu0 0
        %872 = vperm.xlu0 %871, %v655
        %v873 = vpop.permute.xlu0 %872
        %874 = vset.pattern.permute.xlu0 0
        %875 = vperm.xlu0 %874, %v656
        %v876 = vpop.permute.xlu0 %875
        %877 = vset.pattern.permute.xlu0 0
        %878 = vperm.xlu0 %877, %v657
        %v879 = vpop.permute.xlu0 %878
        %880 = vset.pattern.permute.xlu0 0
        %881 = vperm.xlu0 %880, %v658
        %v882 = vpop.permute.xlu0 %881
        %883 = vset.pattern.permute.xlu0 0
        %884 = vperm.xlu0 %883, %v659
        %v885 = vpop.permute.xlu0 %884
        %886 = vset.pattern.permute.xlu0 0
        %887 = vperm.xlu0 %886, %v660
        %v888 = vpop.permute.xlu0 %887
        %889 = vset.pattern.permute.xlu0 0
        %890 = vperm.xlu0 %889, %v661
        %v891 = vpop.permute.xlu0 %890
        %892 = vset.pattern.permute.xlu0 0
        %893 = vperm.xlu0 %892, %v662
        %v894 = vpop.permute.xlu0 %893
        %895 = vset.pattern.permute.xlu0 0
        %896 = vperm.xlu0 %895, %v663
        %v897 = vpop.permute.xlu0 %896
        %898 = vset.pattern.permute.xlu0 0
        %899 = vperm.xlu0 %898, %v664
        %v900 = vpop.permute.xlu0 %899
        %901 = vset.pattern.permute.xlu0 0
        %902 = vperm.xlu0 %901, %v665
        %v903 = vpop.permute.xlu0 %902
        %904 = vset.pattern.permute.xlu0 0
        %905 = vperm.xlu0 %904, %v666
        %v906 = vpop.permute.xlu0 %905
        %907 = vset.pattern.permute.xlu0 0
        %908 = vperm.xlu0 %907, %v667
        %v909 = vpop.permute.xlu0 %908
        %910 = vset.pattern.permute.xlu0 0
        %911 = vperm.xlu0 %910, %v668
        %v912 = vpop.permute.xlu0 %911
        %913 = vset.pattern.permute.xlu0 0
        %914 = vperm.xlu0 %913, %v669
        %v915 = vpop.permute.xlu0 %914
        %916 = vset.pattern.permute.xlu0 0
        %917 = vperm.xlu0 %916, %v670
        %v918 = vpop.permute.xlu0 %917
        %919 = vset.pattern.permute.xlu0 0
        %920 = vperm.xlu0 %919, %v671
        %v921 = vpop.permute.xlu0 %920
        %922 = vset.pattern.permute.xlu0 0
        %923 = vperm.xlu0 %922, %v672
        %v924 = vpop.permute.xlu0 %923
        %925 = vset.pattern.permute.xlu0 0
        %926 = vperm.xlu0 %925, %v673
        %v927 = vpop.permute.xlu0 %926
        %928 = vset.pattern.permute.xlu0 0
        %929 = vperm.xlu0 %928, %v674
        %v930 = vpop.permute.xlu0 %929
        %931 = vset.pattern.permute.xlu0 0
        %932 = vperm.xlu0 %931, %v675
        %v933 = vpop.permute.xlu0 %932
        %934 = vset.pattern.permute.xlu0 0
        %935 = vperm.xlu0 %934, %v676
        %v936 = vpop.permute.xlu0 %935
        %937 = vset.pattern.permute.xlu0 0
        %938 = vperm.xlu0 %937, %v677
        %v939 = vpop.permute.xlu0 %938
        %940 = vset.pattern.permute.xlu0 0
        %941 = vperm.xlu0 %940, %v678
        %v942 = vpop.permute.xlu0 %941
        %943 = vset.pattern.permute.xlu0 0
        %944 = vperm.xlu0 %943, %v679
        %v945 = vpop.permute.xlu0 %944
        %946 = vset.pattern.permute.xlu0 0
        %947 = vperm.xlu0 %946, %v680
        %v948 = vpop.permute.xlu0 %947
        %949 = vset.pattern.permute.xlu0 0
        %950 = vperm.xlu0 %949, %v681
        %v951 = vpop.permute.xlu0 %950
        %952 = vset.pattern.permute.xlu0 0
        %953 = vperm.xlu0 %952, %v682
        %v954 = vpop.permute.xlu0 %953
        %955 = vset.pattern.permute.xlu0 0
        %956 = vperm.xlu0 %955, %v683
        %v957 = vpop.permute.xlu0 %956
        %958 = vset.pattern.permute.xlu0 0
        %959 = vperm.xlu0 %958, %v684
        %v960 = vpop.permute.xlu0 %959
        %961 = vset.pattern.permute.xlu0 0
        %962 = vperm.xlu0 %961, %v685
        %v963 = vpop.permute.xlu0 %962
        %964 = vset.pattern.permute.xlu0 0
        %965 = vperm.xlu0 %964, %v686
        %v966 = vpop.permute.xlu0 %965
        %967 = vset.pattern.permute.xlu0 0
        %968 = vperm.xlu0 %967, %v687
        %v969 = vpop.permute.xlu0 %968
        %970 = vset.pattern.permute.xlu0 0
        %971 = vperm.xlu0 %970, %v688
        %v972 = vpop.permute.xlu0 %971
        %973 = vset.pattern.permute.xlu0 0
        %974 = vperm.xlu0 %973, %v689
        %v975 = vpop.permute.xlu0 %974
        %976 = vset.pattern.permute.xlu0 0
        %977 = vperm.xlu0 %976, %v690
        %v978 = vpop.permute.xlu0 %977
        %979 = vset.pattern.permute.xlu0 0
        %980 = vperm.xlu0 %979, %v691
        %v981 = vpop.permute.xlu0 %980
        %982 = vset.pattern.permute.xlu0 0
        %983 = vperm.xlu0 %982, %v692
        %v984 = vpop.permute.xlu0 %983
        %985 = vset.pattern.permute.xlu0 0
        %986 = vperm.xlu0 %985, %v693
        %v987 = vpop.permute.xlu0 %986
        %988 = vset.pattern.permute.xlu0 0
        %989 = vperm.xlu0 %988, %v694
        %v990 = vpop.permute.xlu0 %989
        %991 = vset.pattern.permute.xlu0 0
        %992 = vperm.xlu0 %991, %v695
        %v993 = vpop.permute.xlu0 %992
        %994 = vset.pattern.permute.xlu0 0
        %995 = vperm.xlu0 %994, %v696
        %v996 = vpop.permute.xlu0 %995
        %997 = vset.pattern.permute.xlu0 0
        %998 = vperm.xlu0 %997, %v697
        %v999 = vpop.permute.xlu0 %998
        %1000 = vset.pattern.permute.xlu0 0
        %1001 = vperm.xlu0 %1000, %v698
        %v1002 = vpop.permute.xlu0 %1001
        %1003 = vset.pattern.permute.xlu0 0
        %1004 = vperm.xlu0 %1003, %v699
        %v1005 = vpop.permute.xlu0 %1004
        %1006 = vset.pattern.permute.xlu0 0
        %1007 = vperm.xlu0 %1006, %v700
        %v1008 = vpop.permute.xlu0 %1007
        %1009 = vset.pattern.permute.xlu0 0
        %1010 = vperm.xlu0 %1009, %v701
        %v1011 = vpop.permute.xlu0 %1010
        %1012 = vset.pattern.permute.xlu0 0
        %1013 = vperm.xlu0 %1012, %v702
        %v1014 = vpop.permute.xlu0 %1013
        %1015 = vset.pattern.permute.xlu0 0
        %1016 = vperm.xlu0 %1015, %v703
        %v1017 = vpop.permute.xlu0 %1016
        %1018 = vset.pattern.permute.xlu0 0
        %1019 = vperm.xlu0 %1018, %v704
        %v1020 = vpop.permute.xlu0 %1019
        %1021 = vset.pattern.permute.xlu0 0
        %1022 = vperm.xlu0 %1021, %v705
        %v1023 = vpop.permute.xlu0 %1022
        %1024 = vset.pattern.permute.xlu0 0
        %1025 = vperm.xlu0 %1024, %v706
        %v1026 = vpop.permute.xlu0 %1025
        %1027 = vset.pattern.permute.xlu0 0
        %1028 = vperm.xlu0 %1027, %v707
        %v1029 = vpop.permute.xlu0 %1028
        %1030 = vset.pattern.permute.xlu0 0
        %1031 = vperm.xlu0 %1030, %v708
        %v1032 = vpop.permute.xlu0 %1031
        %1033 = vset.pattern.permute.xlu0 0
        %1034 = vperm.xlu0 %1033, %v709
        %v1035 = vpop.permute.xlu0 %1034
        %1036 = vset.pattern.permute.xlu0 0
        %1037 = vperm.xlu0 %1036, %v710
        %v1038 = vpop.permute.xlu0 %1037
        %1039 = vset.pattern.permute.xlu0 0
        %1040 = vperm.xlu0 %1039, %v711
        %v1041 = vpop.permute.xlu0 %1040
        %1042 = vset.pattern.permute.xlu0 0
        %1043 = vperm.xlu0 %1042, %v712
        %v1044 = vpop.permute.xlu0 %1043
        %1045 = vset.pattern.permute.xlu0 0
        %1046 = vperm.xlu0 %1045, %v713
        %v1047 = vpop.permute.xlu0 %1046
        %1048 = vset.pattern.permute.xlu0 0
        %1049 = vperm.xlu0 %1048, %v714
        %v1050 = vpop.permute.xlu0 %1049
        %1051 = vset.pattern.permute.xlu0 0
        %1052 = vperm.xlu0 %1051, %v715
        %v1053 = vpop.permute.xlu0 %1052
        %1054 = vset.pattern.permute.xlu0 0
        %1055 = vperm.xlu0 %1054, %v716
        %v1056 = vpop.permute.xlu0 %1055
        %1057 = vset.pattern.permute.xlu0 0
        %1058 = vperm.xlu0 %1057, %v717
        %v1059 = vpop.permute.xlu0 %1058
        %1060 = vset.pattern.permute.xlu0 0
        %1061 = vperm.xlu0 %1060, %v718
        %v1062 = vpop.permute.xlu0 %1061
        %1063 = vset.pattern.permute.xlu0 0
        %1064 = vperm.xlu0 %1063, %v719
        %v1065 = vpop.permute.xlu0 %1064
        %1066 = vset.pattern.permute.xlu0 0
        %1067 = vperm.xlu0 %1066, %v720
        %v1068 = vpop.permute.xlu0 %1067
        %1069 = vset.pattern.permute.xlu0 0
        %1070 = vperm.xlu0 %1069, %v721
        %v1071 = vpop.permute.xlu0 %1070
        %1072 = vset.pattern.permute.xlu0 0
        %1073 = vperm.xlu0 %1072, %v722
        %v1074 = vpop.permute.xlu0 %1073
        %1075 = vset.pattern.permute.xlu0 0
        %1076 = vperm.xlu0 %1075, %v723
        %v1077 = vpop.permute.xlu0 %1076
        %1078 = vset.pattern.permute.xlu0 0
        %1079 = vperm.xlu0 %1078, %v724
        %v1080 = vpop.permute.xlu0 %1079
        %1081 = vset.pattern.permute.xlu0 0
        %1082 = vperm.xlu0 %1081, %v725
        %v1083 = vpop.permute.xlu0 %1082
        %1084 = vset.pattern.permute.xlu0 0
        %1085 = vperm.xlu0 %1084, %v726
        %v1086 = vpop.permute.xlu0 %1085
        %1087 = vset.pattern.permute.xlu0 0
        %1088 = vperm.xlu0 %1087, %v727
        %v1089 = vpop.permute.xlu0 %1088
        %1090 = vset.pattern.permute.xlu0 0
        %1091 = vperm.xlu0 %1090, %v728
        %v1092 = vpop.permute.xlu0 %1091
        %1093 = vset.pattern.permute.xlu0 0
        %1094 = vperm.xlu0 %1093, %v729
        %v1095 = vpop.permute.xlu0 %1094
        %1096 = vset.pattern.permute.xlu0 0
        %1097 = vperm.xlu0 %1096, %v730
        %v1098 = vpop.permute.xlu0 %1097
        %1099 = vset.pattern.permute.xlu0 0
        %1100 = vperm.xlu0 %1099, %v731
        %v1101 = vpop.permute.xlu0 %1100
        %1102 = vset.pattern.permute.xlu0 0
        %1103 = vperm.xlu0 %1102, %v732
        %v1104 = vpop.permute.xlu0 %1103
        %1105 = vset.pattern.permute.xlu0 0
        %1106 = vperm.xlu0 %1105, %v733
        %v1107 = vpop.permute.xlu0 %1106
        %1108 = vset.pattern.permute.xlu0 0
        %1109 = vperm.xlu0 %1108, %v734
        %v1110 = vpop.permute.xlu0 %1109
        %1111 = vset.pattern.permute.xlu0 0
        %1112 = vperm.xlu0 %1111, %v735
        %v1113 = vpop.permute.xlu0 %1112
        %1114 = vset.pattern.permute.xlu0 0
        %1115 = vperm.xlu0 %1114, %v736
        %v1116 = vpop.permute.xlu0 %1115
        %1117 = vset.pattern.permute.xlu0 0
        %1118 = vperm.xlu0 %1117, %v737
        %v1119 = vpop.permute.xlu0 %1118
        %1120 = vset.pattern.permute.xlu0 0
        %1121 = vperm.xlu0 %1120, %v738
        %v1122 = vpop.permute.xlu0 %1121
        %vm1123 = vcmp.eq.s32.totalorder %v741, 1
        %vm1124 = vcmp.eq.s32.totalorder %v744, 1
        %vm1125 = vcmp.eq.s32.totalorder %v747, 1
        %vm1126 = vcmp.eq.s32.totalorder %v750, 1
        %vm1127 = vcmp.eq.s32.totalorder %v753, 1
        %vm1128 = vcmp.eq.s32.totalorder %v756, 1
        %vm1129 = vcmp.eq.s32.totalorder %v759, 1
        %vm1130 = vcmp.eq.s32.totalorder %v762, 1
        %vm1131 = vcmp.eq.s32.totalorder %v765, 1
        %vm1132 = vcmp.eq.s32.totalorder %v768, 1
        %vm1133 = vcmp.eq.s32.totalorder %v771, 1
        %vm1134 = vcmp.eq.s32.totalorder %v774, 1
        %vm1135 = vcmp.eq.s32.totalorder %v777, 1
        %vm1136 = vcmp.eq.s32.totalorder %v780, 1
        %vm1137 = vcmp.eq.s32.totalorder %v783, 1
        %vm1138 = vcmp.eq.s32.totalorder %v786, 1
        %vm1139 = vcmp.eq.s32.totalorder %v789, 1
        %vm1140 = vcmp.eq.s32.totalorder %v792, 1
        %vm1141 = vcmp.eq.s32.totalorder %v795, 1
        %vm1142 = vcmp.eq.s32.totalorder %v798, 1
        %vm1143 = vcmp.eq.s32.totalorder %v801, 1
        %vm1144 = vcmp.eq.s32.totalorder %v804, 1
        %vm1145 = vcmp.eq.s32.totalorder %v807, 1
        %vm1146 = vcmp.eq.s32.totalorder %v810, 1
        %vm1147 = vcmp.eq.s32.totalorder %v813, 1
        %vm1148 = vcmp.eq.s32.totalorder %v816, 1
        %vm1149 = vcmp.eq.s32.totalorder %v819, 1
        %vm1150 = vcmp.eq.s32.totalorder %v822, 1
        %vm1151 = vcmp.eq.s32.totalorder %v825, 1
        %vm1152 = vcmp.eq.s32.totalorder %v828, 1
        %vm1153 = vcmp.eq.s32.totalorder %v831, 1
        %vm1154 = vcmp.eq.s32.totalorder %v834, 1
        %vm1155 = vcmp.eq.s32.totalorder %v837, 1
        %vm1156 = vcmp.eq.s32.totalorder %v840, 1
        %vm1157 = vcmp.eq.s32.totalorder %v843, 1
        %vm1158 = vcmp.eq.s32.totalorder %v846, 1
        %vm1159 = vcmp.eq.s32.totalorder %v849, 1
        %vm1160 = vcmp.eq.s32.totalorder %v852, 1
        %vm1161 = vcmp.eq.s32.totalorder %v855, 1
        %vm1162 = vcmp.eq.s32.totalorder %v858, 1
        %vm1163 = vcmp.eq.s32.totalorder %v861, 1
        %vm1164 = vcmp.eq.s32.totalorder %v864, 1
        %vm1165 = vcmp.eq.s32.totalorder %v867, 1
        %vm1166 = vcmp.eq.s32.totalorder %v870, 1
        %vm1167 = vcmp.eq.s32.totalorder %v873, 1
        %vm1168 = vcmp.eq.s32.totalorder %v876, 1
        %vm1169 = vcmp.eq.s32.totalorder %v879, 1
        %vm1170 = vcmp.eq.s32.totalorder %v882, 1
        %vm1171 = vcmp.eq.s32.totalorder %v885, 1
        %vm1172 = vcmp.eq.s32.totalorder %v888, 1
        %vm1173 = vcmp.eq.s32.totalorder %v891, 1
        %vm1174 = vcmp.eq.s32.totalorder %v894, 1
        %vm1175 = vcmp.eq.s32.totalorder %v897, 1
        %vm1176 = vcmp.eq.s32.totalorder %v900, 1
        %vm1177 = vcmp.eq.s32.totalorder %v903, 1
        %vm1178 = vcmp.eq.s32.totalorder %v906, 1
        %vm1179 = vcmp.eq.s32.totalorder %v909, 1
        %vm1180 = vcmp.eq.s32.totalorder %v912, 1
        %vm1181 = vcmp.eq.s32.totalorder %v915, 1
        %vm1182 = vcmp.eq.s32.totalorder %v918, 1
        %vm1183 = vcmp.eq.s32.totalorder %v921, 1
        %vm1184 = vcmp.eq.s32.totalorder %v924, 1
        %vm1185 = vcmp.eq.s32.totalorder %v927, 1
        %vm1186 = vcmp.eq.s32.totalorder %v930, 1
        %vm1187 = vcmp.eq.s32.totalorder %v933, 1
        %vm1188 = vcmp.eq.s32.totalorder %v936, 1
        %vm1189 = vcmp.eq.s32.totalorder %v939, 1
        %vm1190 = vcmp.eq.s32.totalorder %v942, 1
        %vm1191 = vcmp.eq.s32.totalorder %v945, 1
        %vm1192 = vcmp.eq.s32.totalorder %v948, 1
        %vm1193 = vcmp.eq.s32.totalorder %v951, 1
        %vm1194 = vcmp.eq.s32.totalorder %v954, 1
        %vm1195 = vcmp.eq.s32.totalorder %v957, 1
        %vm1196 = vcmp.eq.s32.totalorder %v960, 1
        %vm1197 = vcmp.eq.s32.totalorder %v963, 1
        %vm1198 = vcmp.eq.s32.totalorder %v966, 1
        %vm1199 = vcmp.eq.s32.totalorder %v969, 1
        %vm1200 = vcmp.eq.s32.totalorder %v972, 1
        %vm1201 = vcmp.eq.s32.totalorder %v975, 1
        %vm1202 = vcmp.eq.s32.totalorder %v978, 1
        %vm1203 = vcmp.eq.s32.totalorder %v981, 1
        %vm1204 = vcmp.eq.s32.totalorder %v984, 1
        %vm1205 = vcmp.eq.s32.totalorder %v987, 1
        %vm1206 = vcmp.eq.s32.totalorder %v990, 1
        %vm1207 = vcmp.eq.s32.totalorder %v993, 1
        %vm1208 = vcmp.eq.s32.totalorder %v996, 1
        %vm1209 = vcmp.eq.s32.totalorder %v999, 1
        %vm1210 = vcmp.eq.s32.totalorder %v1002, 1
        %vm1211 = vcmp.eq.s32.totalorder %v1005, 1
        %vm1212 = vcmp.eq.s32.totalorder %v1008, 1
        %vm1213 = vcmp.eq.s32.totalorder %v1011, 1
        %vm1214 = vcmp.eq.s32.totalorder %v1014, 1
        %vm1215 = vcmp.eq.s32.totalorder %v1017, 1
        %vm1216 = vcmp.eq.s32.totalorder %v1020, 1
        %vm1217 = vcmp.eq.s32.totalorder %v1023, 1
        %vm1218 = vcmp.eq.s32.totalorder %v1026, 1
        %vm1219 = vcmp.eq.s32.totalorder %v1029, 1
        %vm1220 = vcmp.eq.s32.totalorder %v1032, 1
        %vm1221 = vcmp.eq.s32.totalorder %v1035, 1
        %vm1222 = vcmp.eq.s32.totalorder %v1038, 1
        %vm1223 = vcmp.eq.s32.totalorder %v1041, 1
        %vm1224 = vcmp.eq.s32.totalorder %v1044, 1
        %vm1225 = vcmp.eq.s32.totalorder %v1047, 1
        %vm1226 = vcmp.eq.s32.totalorder %v1050, 1
        %vm1227 = vcmp.eq.s32.totalorder %v1053, 1
        %vm1228 = vcmp.eq.s32.totalorder %v1056, 1
        %vm1229 = vcmp.eq.s32.totalorder %v1059, 1
        %vm1230 = vcmp.eq.s32.totalorder %v1062, 1
        %vm1231 = vcmp.eq.s32.totalorder %v1065, 1
        %vm1232 = vcmp.eq.s32.totalorder %v1068, 1
        %vm1233 = vcmp.eq.s32.totalorder %v1071, 1
        %vm1234 = vcmp.eq.s32.totalorder %v1074, 1
        %vm1235 = vcmp.eq.s32.totalorder %v1077, 1
        %vm1236 = vcmp.eq.s32.totalorder %v1080, 1
        %vm1237 = vcmp.eq.s32.totalorder %v1083, 1
        %vm1238 = vcmp.eq.s32.totalorder %v1086, 1
        %vm1239 = vcmp.eq.s32.totalorder %v1089, 1
        %vm1240 = vcmp.eq.s32.totalorder %v1092, 1
        %vm1241 = vcmp.eq.s32.totalorder %v1095, 1
        %vm1242 = vcmp.eq.s32.totalorder %v1098, 1
        %vm1243 = vcmp.eq.s32.totalorder %v1101, 1
        %vm1244 = vcmp.eq.s32.totalorder %v1104, 1
        %vm1245 = vcmp.eq.s32.totalorder %v1107, 1
        %vm1246 = vcmp.eq.s32.totalorder %v1110, 1
        %vm1247 = vcmp.eq.s32.totalorder %v1113, 1
        %vm1248 = vcmp.eq.s32.totalorder %v1116, 1
        %vm1249 = vcmp.eq.s32.totalorder %v1119, 1
        %vm1250 = vcmp.eq.s32.totalorder %v1122, 1
        %v1251 = vsel %vm607, 1, 0
        %v1252 = vsel %vm608, 1, 0
        %v1253 = vsel %vm609, 1, 0
        %v1254 = vsel %vm610, 1, 0
        %v1255 = vlaneseq
        %v1256 = vshrl.u32 %v1255, 7
        %v1257 = vsub.s32 0, %v1256
        %v1258 = vrot.slane %v1251, %v1257
        %v1259 = vlaneseq
        %v1260 = vshrl.u32 %v1259, 7
        %v1261 = vsub.s32 1, %v1260
        %v1262 = vrot.slane %v1251, %v1261
        %v1263 = vlaneseq
        %v1264 = vshrl.u32 %v1263, 7
        %v1265 = vsub.s32 0, %v1264
        %v1266 = vrot.slane %v1252, %v1265
        %v1267 = vlaneseq
        %v1268 = vshrl.u32 %v1267, 7
        %v1269 = vsub.s32 1, %v1268
        %v1270 = vrot.slane %v1252, %v1269
        %v1271 = vlaneseq
        %v1272 = vshrl.u32 %v1271, 7
        %v1273 = vsub.s32 0, %v1272
        %v1274 = vrot.slane %v1253, %v1273
        %v1275 = vlaneseq
        %v1276 = vshrl.u32 %v1275, 7
        %v1277 = vsub.s32 1, %v1276
        %v1278 = vrot.slane %v1253, %v1277
        %v1279 = vlaneseq
        %v1280 = vshrl.u32 %v1279, 7
        %v1281 = vsub.s32 0, %v1280
        %v1282 = vrot.slane %v1254, %v1281
        %v1283 = vlaneseq
        %v1284 = vshrl.u32 %v1283, 7
        %v1285 = vsub.s32 1, %v1284
        %v1286 = vrot.slane %v1254, %v1285
        %vm1287 = vcmp.eq.s32.totalorder %v1258, 1
        %vm1288 = vcmp.eq.s32.totalorder %v1262, 1
        %vm1289 = vcmp.eq.s32.totalorder %v1266, 1
        %vm1290 = vcmp.eq.s32.totalorder %v1270, 1
        %vm1291 = vcmp.eq.s32.totalorder %v1274, 1
        %vm1292 = vcmp.eq.s32.totalorder %v1278, 1
        %vm1293 = vcmp.eq.s32.totalorder %v1282, 1
        %vm1294 = vcmp.eq.s32.totalorder %v1286, 1
        %vm1295 = vmand %vm1123, %vm1287
        %vm1296 = vmand %vm1123, %vm1288
        %vm1297 = vmand %vm1124, %vm1287
        %vm1298 = vmand %vm1124, %vm1288
        %vm1299 = vmand %vm1125, %vm1287
        %vm1300 = vmand %vm1125, %vm1288
        %vm1301 = vmand %vm1126, %vm1287
        %vm1302 = vmand %vm1126, %vm1288
        %vm1303 = vmand %vm1127, %vm1287
        %vm1304 = vmand %vm1127, %vm1288
        %vm1305 = vmand %vm1128, %vm1287
        %vm1306 = vmand %vm1128, %vm1288
        %vm1307 = vmand %vm1129, %vm1287
        %vm1308 = vmand %vm1129, %vm1288
        %vm1309 = vmand %vm1130, %vm1287
        %vm1310 = vmand %vm1130, %vm1288
        %vm1311 = vmand %vm1131, %vm1287
        %vm1312 = vmand %vm1131, %vm1288
        %vm1313 = vmand %vm1132, %vm1287
        %vm1314 = vmand %vm1132, %vm1288
        %vm1315 = vmand %vm1133, %vm1287
        %vm1316 = vmand %vm1133, %vm1288
        %vm1317 = vmand %vm1134, %vm1287
        %vm1318 = vmand %vm1134, %vm1288
        %vm1319 = vmand %vm1135, %vm1287
        %vm1320 = vmand %vm1135, %vm1288
        %vm1321 = vmand %vm1136, %vm1287
        %vm1322 = vmand %vm1136, %vm1288
        %vm1323 = vmand %vm1137, %vm1287
        %vm1324 = vmand %vm1137, %vm1288
        %vm1325 = vmand %vm1138, %vm1287
        %vm1326 = vmand %vm1138, %vm1288
        %vm1327 = vmand %vm1139, %vm1287
        %vm1328 = vmand %vm1139, %vm1288
        %vm1329 = vmand %vm1140, %vm1287
        %vm1330 = vmand %vm1140, %vm1288
        %vm1331 = vmand %vm1141, %vm1287
        %vm1332 = vmand %vm1141, %vm1288
        %vm1333 = vmand %vm1142, %vm1287
        %vm1334 = vmand %vm1142, %vm1288
        %vm1335 = vmand %vm1143, %vm1287
        %vm1336 = vmand %vm1143, %vm1288
        %vm1337 = vmand %vm1144, %vm1287
        %vm1338 = vmand %vm1144, %vm1288
        %vm1339 = vmand %vm1145, %vm1287
        %vm1340 = vmand %vm1145, %vm1288
        %vm1341 = vmand %vm1146, %vm1287
        %vm1342 = vmand %vm1146, %vm1288
        %vm1343 = vmand %vm1147, %vm1287
        %vm1344 = vmand %vm1147, %vm1288
        %vm1345 = vmand %vm1148, %vm1287
        %vm1346 = vmand %vm1148, %vm1288
        %vm1347 = vmand %vm1149, %vm1287
        %vm1348 = vmand %vm1149, %vm1288
        %vm1349 = vmand %vm1150, %vm1287
        %vm1350 = vmand %vm1150, %vm1288
        %vm1351 = vmand %vm1151, %vm1287
        %vm1352 = vmand %vm1151, %vm1288
        %vm1353 = vmand %vm1152, %vm1287
        %vm1354 = vmand %vm1152, %vm1288
        %vm1355 = vmand %vm1153, %vm1287
        %vm1356 = vmand %vm1153, %vm1288
        %vm1357 = vmand %vm1154, %vm1287
        %vm1358 = vmand %vm1154, %vm1288
        %vm1359 = vmand %vm1155, %vm1289
        %vm1360 = vmand %vm1155, %vm1290
        %vm1361 = vmand %vm1156, %vm1289
        %vm1362 = vmand %vm1156, %vm1290
        %vm1363 = vmand %vm1157, %vm1289
        %vm1364 = vmand %vm1157, %vm1290
        %vm1365 = vmand %vm1158, %vm1289
        %vm1366 = vmand %vm1158, %vm1290
        %vm1367 = vmand %vm1159, %vm1289
        %vm1368 = vmand %vm1159, %vm1290
        %vm1369 = vmand %vm1160, %vm1289
        %vm1370 = vmand %vm1160, %vm1290
        %vm1371 = vmand %vm1161, %vm1289
        %vm1372 = vmand %vm1161, %vm1290
        %vm1373 = vmand %vm1162, %vm1289
        %vm1374 = vmand %vm1162, %vm1290
        %vm1375 = vmand %vm1163, %vm1289
        %vm1376 = vmand %vm1163, %vm1290
        %vm1377 = vmand %vm1164, %vm1289
        %vm1378 = vmand %vm1164, %vm1290
        %vm1379 = vmand %vm1165, %vm1289
        %vm1380 = vmand %vm1165, %vm1290
        %vm1381 = vmand %vm1166, %vm1289
        %vm1382 = vmand %vm1166, %vm1290
        %vm1383 = vmand %vm1167, %vm1289
        %vm1384 = vmand %vm1167, %vm1290
        %vm1385 = vmand %vm1168, %vm1289
        %vm1386 = vmand %vm1168, %vm1290
        %vm1387 = vmand %vm1169, %vm1289
        %vm1388 = vmand %vm1169, %vm1290
        %vm1389 = vmand %vm1170, %vm1289
        %vm1390 = vmand %vm1170, %vm1290
        %vm1391 = vmand %vm1171, %vm1289
        %vm1392 = vmand %vm1171, %vm1290
        %vm1393 = vmand %vm1172, %vm1289
        %vm1394 = vmand %vm1172, %vm1290
        %vm1395 = vmand %vm1173, %vm1289
        %vm1396 = vmand %vm1173, %vm1290
        %vm1397 = vmand %vm1174, %vm1289
        %vm1398 = vmand %vm1174, %vm1290
        %vm1399 = vmand %vm1175, %vm1289
        %vm1400 = vmand %vm1175, %vm1290
        %vm1401 = vmand %vm1176, %vm1289
        %vm1402 = vmand %vm1176, %vm1290
        %vm1403 = vmand %vm1177, %vm1289
        %vm1404 = vmand %vm1177, %vm1290
        %vm1405 = vmand %vm1178, %vm1289
        %vm1406 = vmand %vm1178, %vm1290
        %vm1407 = vmand %vm1179, %vm1289
        %vm1408 = vmand %vm1179, %vm1290
        %vm1409 = vmand %vm1180, %vm1289
        %vm1410 = vmand %vm1180, %vm1290
        %vm1411 = vmand %vm1181, %vm1289
        %vm1412 = vmand %vm1181, %vm1290
        %vm1413 = vmand %vm1182, %vm1289
        %vm1414 = vmand %vm1182, %vm1290
        %vm1415 = vmand %vm1183, %vm1289
        %vm1416 = vmand %vm1183, %vm1290
        %vm1417 = vmand %vm1184, %vm1289
        %vm1418 = vmand %vm1184, %vm1290
        %vm1419 = vmand %vm1185, %vm1289
        %vm1420 = vmand %vm1185, %vm1290
        %vm1421 = vmand %vm1186, %vm1289
        %vm1422 = vmand %vm1186, %vm1290
        %vm1423 = vmand %vm1187, %vm1291
        %vm1424 = vmand %vm1187, %vm1292
        %vm1425 = vmand %vm1188, %vm1291
        %vm1426 = vmand %vm1188, %vm1292
        %vm1427 = vmand %vm1189, %vm1291
        %vm1428 = vmand %vm1189, %vm1292
        %vm1429 = vmand %vm1190, %vm1291
        %vm1430 = vmand %vm1190, %vm1292
        %vm1431 = vmand %vm1191, %vm1291
        %vm1432 = vmand %vm1191, %vm1292
        %vm1433 = vmand %vm1192, %vm1291
        %vm1434 = vmand %vm1192, %vm1292
        %vm1435 = vmand %vm1193, %vm1291
        %vm1436 = vmand %vm1193, %vm1292
        %vm1437 = vmand %vm1194, %vm1291
        %vm1438 = vmand %vm1194, %vm1292
        %vm1439 = vmand %vm1195, %vm1291
        %vm1440 = vmand %vm1195, %vm1292
        %vm1441 = vmand %vm1196, %vm1291
        %vm1442 = vmand %vm1196, %vm1292
        %vm1443 = vmand %vm1197, %vm1291
        %vm1444 = vmand %vm1197, %vm1292
        %vm1445 = vmand %vm1198, %vm1291
        %vm1446 = vmand %vm1198, %vm1292
        %vm1447 = vmand %vm1199, %vm1291
        %vm1448 = vmand %vm1199, %vm1292
        %vm1449 = vmand %vm1200, %vm1291
        %vm1450 = vmand %vm1200, %vm1292
        %vm1451 = vmand %vm1201, %vm1291
        %vm1452 = vmand %vm1201, %vm1292
        %vm1453 = vmand %vm1202, %vm1291
        %vm1454 = vmand %vm1202, %vm1292
        %vm1455 = vmand %vm1203, %vm1291
        %vm1456 = vmand %vm1203, %vm1292
        %vm1457 = vmand %vm1204, %vm1291
        %vm1458 = vmand %vm1204, %vm1292
        %vm1459 = vmand %vm1205, %vm1291
        %vm1460 = vmand %vm1205, %vm1292
        %vm1461 = vmand %vm1206, %vm1291
        %vm1462 = vmand %vm1206, %vm1292
        %vm1463 = vmand %vm1207, %vm1291
        %vm1464 = vmand %vm1207, %vm1292
        %vm1465 = vmand %vm1208, %vm1291
        %vm1466 = vmand %vm1208, %vm1292
        %vm1467 = vmand %vm1209, %vm1291
        %vm1468 = vmand %vm1209, %vm1292
        %vm1469 = vmand %vm1210, %vm1291
        %vm1470 = vmand %vm1210, %vm1292
        %vm1471 = vmand %vm1211, %vm1291
        %vm1472 = vmand %vm1211, %vm1292
        %vm1473 = vmand %vm1212, %vm1291
        %vm1474 = vmand %vm1212, %vm1292
        %vm1475 = vmand %vm1213, %vm1291
        %vm1476 = vmand %vm1213, %vm1292
        %vm1477 = vmand %vm1214, %vm1291
        %vm1478 = vmand %vm1214, %vm1292
        %vm1479 = vmand %vm1215, %vm1291
        %vm1480 = vmand %vm1215, %vm1292
        %vm1481 = vmand %vm1216, %vm1291
        %vm1482 = vmand %vm1216, %vm1292
        %vm1483 = vmand %vm1217, %vm1291
        %vm1484 = vmand %vm1217, %vm1292
        %vm1485 = vmand %vm1218, %vm1291
        %vm1486 = vmand %vm1218, %vm1292
        %vm1487 = vmand %vm1219, %vm1293
        %vm1488 = vmand %vm1219, %vm1294
        %vm1489 = vmand %vm1220, %vm1293
        %vm1490 = vmand %vm1220, %vm1294
        %vm1491 = vmand %vm1221, %vm1293
        %vm1492 = vmand %vm1221, %vm1294
        %vm1493 = vmand %vm1222, %vm1293
        %vm1494 = vmand %vm1222, %vm1294
        %vm1495 = vmand %vm1223, %vm1293
        %vm1496 = vmand %vm1223, %vm1294
        %vm1497 = vmand %vm1224, %vm1293
        %vm1498 = vmand %vm1224, %vm1294
        %vm1499 = vmand %vm1225, %vm1293
        %vm1500 = vmand %vm1225, %vm1294
        %vm1501 = vmand %vm1226, %vm1293
        %vm1502 = vmand %vm1226, %vm1294
        %vm1503 = vmand %vm1227, %vm1293
        %vm1504 = vmand %vm1227, %vm1294
        %vm1505 = vmand %vm1228, %vm1293
        %vm1506 = vmand %vm1228, %vm1294
        %vm1507 = vmand %vm1229, %vm1293
        %vm1508 = vmand %vm1229, %vm1294
        %vm1509 = vmand %vm1230, %vm1293
        %vm1510 = vmand %vm1230, %vm1294
        %vm1511 = vmand %vm1231, %vm1293
        %vm1512 = vmand %vm1231, %vm1294
        %vm1513 = vmand %vm1232, %vm1293
        %vm1514 = vmand %vm1232, %vm1294
        %vm1515 = vmand %vm1233, %vm1293
        %vm1516 = vmand %vm1233, %vm1294
        %vm1517 = vmand %vm1234, %vm1293
        %vm1518 = vmand %vm1234, %vm1294
        %vm1519 = vmand %vm1235, %vm1293
        %vm1520 = vmand %vm1235, %vm1294
        %vm1521 = vmand %vm1236, %vm1293
        %vm1522 = vmand %vm1236, %vm1294
        %vm1523 = vmand %vm1237, %vm1293
        %vm1524 = vmand %vm1237, %vm1294
        %vm1525 = vmand %vm1238, %vm1293
        %vm1526 = vmand %vm1238, %vm1294
        %vm1527 = vmand %vm1239, %vm1293
        %vm1528 = vmand %vm1239, %vm1294
        %vm1529 = vmand %vm1240, %vm1293
        %vm1530 = vmand %vm1240, %vm1294
        %vm1531 = vmand %vm1241, %vm1293
        %vm1532 = vmand %vm1241, %vm1294
        %vm1533 = vmand %vm1242, %vm1293
        %vm1534 = vmand %vm1242, %vm1294
        %vm1535 = vmand %vm1243, %vm1293
        %vm1536 = vmand %vm1243, %vm1294
        %vm1537 = vmand %vm1244, %vm1293
        %vm1538 = vmand %vm1244, %vm1294
        %vm1539 = vmand %vm1245, %vm1293
        %vm1540 = vmand %vm1245, %vm1294
        %vm1541 = vmand %vm1246, %vm1293
        %vm1542 = vmand %vm1246, %vm1294
        %vm1543 = vmand %vm1247, %vm1293
        %vm1544 = vmand %vm1247, %vm1294
        %vm1545 = vmand %vm1248, %vm1293
        %vm1546 = vmand %vm1248, %vm1294
        %vm1547 = vmand %vm1249, %vm1293
        %vm1548 = vmand %vm1249, %vm1294
        %vm1549 = vmand %vm1250, %vm1293
        %vm1550 = vmand %vm1250, %vm1294
        %v1551 = vld [vmem:[%s272] sm:$0xff]
        %v1552 = vld [vmem:[%s272 + $0x8] sm:$0xff]
        %v1553 = vld [vmem:[%s272 + $0x10] sm:$0xff]
        %v1554 = vld [vmem:[%s272 + $0x18] sm:$0xff]
        %v1555 = vld [vmem:[%s272 + $0x20] sm:$0xff]
        %v1556 = vld [vmem:[%s272 + $0x28] sm:$0xff]
        %v1557 = vld [vmem:[%s272 + $0x30] sm:$0xff]
        %v1558 = vld [vmem:[%s272 + $0x38] sm:$0xff]
        %v1559 = vld [vmem:[%s272 + $0x40] sm:$0xff]
        %v1560 = vld [vmem:[%s272 + $0x48] sm:$0xff]
        %v1561 = vld [vmem:[%s272 + $0x50] sm:$0xff]
        %v1562 = vld [vmem:[%s272 + $0x58] sm:$0xff]
        %v1563 = vld [vmem:[%s272 + $0x60] sm:$0xff]
        %v1564 = vld [vmem:[%s272 + $0x68] sm:$0xff]
        %v1565 = vld [vmem:[%s272 + $0x70] sm:$0xff]
        %v1566 = vld [vmem:[%s272 + $0x78] sm:$0xff]
        %v1567 = vld [vmem:[%s272 + $0x80] sm:$0xff]
        %v1568 = vld [vmem:[%s272 + $0x88] sm:$0xff]
        %v1569 = vld [vmem:[%s272 + $0x90] sm:$0xff]
        %v1570 = vld [vmem:[%s272 + $0x98] sm:$0xff]
        %v1571 = vld [vmem:[%s272 + $0xa0] sm:$0xff]
        %v1572 = vld [vmem:[%s272 + $0xa8] sm:$0xff]
        %v1573 = vld [vmem:[%s272 + $0xb0] sm:$0xff]
        %v1574 = vld [vmem:[%s272 + $0xb8] sm:$0xff]
        %v1575 = vld [vmem:[%s272 + $0xc0] sm:$0xff]
        %v1576 = vld [vmem:[%s272 + $0xc8] sm:$0xff]
        %v1577 = vld [vmem:[%s272 + $0xd0] sm:$0xff]
        %v1578 = vld [vmem:[%s272 + $0xd8] sm:$0xff]
        %v1579 = vld [vmem:[%s272 + $0xe0] sm:$0xff]
        %v1580 = vld [vmem:[%s272 + $0xe8] sm:$0xff]
        %v1581 = vld [vmem:[%s272 + $0xf0] sm:$0xff]
        %v1582 = vld [vmem:[%s272 + $0xf8] sm:$0xff]
        %v1583 = vld [vmem:[%s272 + $0x100] sm:$0xff]
        %v1584 = vld [vmem:[%s272 + $0x108] sm:$0xff]
        %v1585 = vld [vmem:[%s272 + $0x110] sm:$0xff]
        %v1586 = vld [vmem:[%s272 + $0x118] sm:$0xff]
        %v1587 = vld [vmem:[%s272 + $0x120] sm:$0xff]
        %v1588 = vld [vmem:[%s272 + $0x128] sm:$0xff]
        %v1589 = vld [vmem:[%s272 + $0x130] sm:$0xff]
        %v1590 = vld [vmem:[%s272 + $0x138] sm:$0xff]
        %v1591 = vld [vmem:[%s272 + $0x140] sm:$0xff]
        %v1592 = vld [vmem:[%s272 + $0x148] sm:$0xff]
        %v1593 = vld [vmem:[%s272 + $0x150] sm:$0xff]
        %v1594 = vld [vmem:[%s272 + $0x158] sm:$0xff]
        %v1595 = vld [vmem:[%s272 + $0x160] sm:$0xff]
        %v1596 = vld [vmem:[%s272 + $0x168] sm:$0xff]
        %v1597 = vld [vmem:[%s272 + $0x170] sm:$0xff]
        %v1598 = vld [vmem:[%s272 + $0x178] sm:$0xff]
        %v1599 = vld [vmem:[%s272 + $0x180] sm:$0xff]
        %v1600 = vld [vmem:[%s272 + $0x188] sm:$0xff]
        %v1601 = vld [vmem:[%s272 + $0x190] sm:$0xff]
        %v1602 = vld [vmem:[%s272 + $0x198] sm:$0xff]
        %v1603 = vld [vmem:[%s272 + $0x1a0] sm:$0xff]
        %v1604 = vld [vmem:[%s272 + $0x1a8] sm:$0xff]
        %v1605 = vld [vmem:[%s272 + $0x1b0] sm:$0xff]
        %v1606 = vld [vmem:[%s272 + $0x1b8] sm:$0xff]
        %v1607 = vld [vmem:[%s272 + $0x1c0] sm:$0xff]
        %v1608 = vld [vmem:[%s272 + $0x1c8] sm:$0xff]
        %v1609 = vld [vmem:[%s272 + $0x1d0] sm:$0xff]
        %v1610 = vld [vmem:[%s272 + $0x1d8] sm:$0xff]
        %v1611 = vld [vmem:[%s272 + $0x1e0] sm:$0xff]
        %v1612 = vld [vmem:[%s272 + $0x1e8] sm:$0xff]
        %v1613 = vld [vmem:[%s272 + $0x1f0] sm:$0xff]
        %v1614 = vld [vmem:[%s272 + $0x1f8] sm:$0xff]
        %v1615 = vld [vmem:[%s272 + $0x200] sm:$0xff]
        %v1616 = vld [vmem:[%s272 + $0x208] sm:$0xff]
        %v1617 = vld [vmem:[%s272 + $0x210] sm:$0xff]
        %v1618 = vld [vmem:[%s272 + $0x218] sm:$0xff]
        %v1619 = vld [vmem:[%s272 + $0x220] sm:$0xff]
        %v1620 = vld [vmem:[%s272 + $0x228] sm:$0xff]
        %v1621 = vld [vmem:[%s272 + $0x230] sm:$0xff]
        %v1622 = vld [vmem:[%s272 + $0x238] sm:$0xff]
        %v1623 = vld [vmem:[%s272 + $0x240] sm:$0xff]
        %v1624 = vld [vmem:[%s272 + $0x248] sm:$0xff]
        %v1625 = vld [vmem:[%s272 + $0x250] sm:$0xff]
        %v1626 = vld [vmem:[%s272 + $0x258] sm:$0xff]
        %v1627 = vld [vmem:[%s272 + $0x260] sm:$0xff]
        %v1628 = vld [vmem:[%s272 + $0x268] sm:$0xff]
        %v1629 = vld [vmem:[%s272 + $0x270] sm:$0xff]
        %v1630 = vld [vmem:[%s272 + $0x278] sm:$0xff]
        %v1631 = vld [vmem:[%s272 + $0x280] sm:$0xff]
        %v1632 = vld [vmem:[%s272 + $0x288] sm:$0xff]
        %v1633 = vld [vmem:[%s272 + $0x290] sm:$0xff]
        %v1634 = vld [vmem:[%s272 + $0x298] sm:$0xff]
        %v1635 = vld [vmem:[%s272 + $0x2a0] sm:$0xff]
        %v1636 = vld [vmem:[%s272 + $0x2a8] sm:$0xff]
        %v1637 = vld [vmem:[%s272 + $0x2b0] sm:$0xff]
        %v1638 = vld [vmem:[%s272 + $0x2b8] sm:$0xff]
        %v1639 = vld [vmem:[%s272 + $0x2c0] sm:$0xff]
        %v1640 = vld [vmem:[%s272 + $0x2c8] sm:$0xff]
        %v1641 = vld [vmem:[%s272 + $0x2d0] sm:$0xff]
        %v1642 = vld [vmem:[%s272 + $0x2d8] sm:$0xff]
        %v1643 = vld [vmem:[%s272 + $0x2e0] sm:$0xff]
        %v1644 = vld [vmem:[%s272 + $0x2e8] sm:$0xff]
        %v1645 = vld [vmem:[%s272 + $0x2f0] sm:$0xff]
        %v1646 = vld [vmem:[%s272 + $0x2f8] sm:$0xff]
        %v1647 = vld [vmem:[%s272 + $0x300] sm:$0xff]
        %v1648 = vld [vmem:[%s272 + $0x308] sm:$0xff]
        %v1649 = vld [vmem:[%s272 + $0x310] sm:$0xff]
        %v1650 = vld [vmem:[%s272 + $0x318] sm:$0xff]
        %v1651 = vld [vmem:[%s272 + $0x320] sm:$0xff]
        %v1652 = vld [vmem:[%s272 + $0x328] sm:$0xff]
        %v1653 = vld [vmem:[%s272 + $0x330] sm:$0xff]
        %v1654 = vld [vmem:[%s272 + $0x338] sm:$0xff]
        %v1655 = vld [vmem:[%s272 + $0x340] sm:$0xff]
        %v1656 = vld [vmem:[%s272 + $0x348] sm:$0xff]
        %v1657 = vld [vmem:[%s272 + $0x350] sm:$0xff]
        %v1658 = vld [vmem:[%s272 + $0x358] sm:$0xff]
        %v1659 = vld [vmem:[%s272 + $0x360] sm:$0xff]
        %v1660 = vld [vmem:[%s272 + $0x368] sm:$0xff]
        %v1661 = vld [vmem:[%s272 + $0x370] sm:$0xff]
        %v1662 = vld [vmem:[%s272 + $0x378] sm:$0xff]
        %v1663 = vld [vmem:[%s272 + $0x380] sm:$0xff]
        %v1664 = vld [vmem:[%s272 + $0x388] sm:$0xff]
        %v1665 = vld [vmem:[%s272 + $0x390] sm:$0xff]
        %v1666 = vld [vmem:[%s272 + $0x398] sm:$0xff]
        %v1667 = vld [vmem:[%s272 + $0x3a0] sm:$0xff]
        %v1668 = vld [vmem:[%s272 + $0x3a8] sm:$0xff]
        %v1669 = vld [vmem:[%s272 + $0x3b0] sm:$0xff]
        %v1670 = vld [vmem:[%s272 + $0x3b8] sm:$0xff]
        %v1671 = vld [vmem:[%s272 + $0x3c0] sm:$0xff]
        %v1672 = vld [vmem:[%s272 + $0x3c8] sm:$0xff]
        %v1673 = vld [vmem:[%s272 + $0x3d0] sm:$0xff]
        %v1674 = vld [vmem:[%s272 + $0x3d8] sm:$0xff]
        %v1675 = vld [vmem:[%s272 + $0x3e0] sm:$0xff]
        %v1676 = vld [vmem:[%s272 + $0x3e8] sm:$0xff]
        %v1677 = vld [vmem:[%s272 + $0x3f0] sm:$0xff]
        %v1678 = vld [vmem:[%s272 + $0x3f8] sm:$0xff]
        %v1679 = vld [vmem:[%s272 + $0x400] sm:$0xff]
        %v1680 = vld [vmem:[%s272 + $0x408] sm:$0xff]
        %v1681 = vld [vmem:[%s272 + $0x410] sm:$0xff]
        %v1682 = vld [vmem:[%s272 + $0x418] sm:$0xff]
        %v1683 = vld [vmem:[%s272 + $0x420] sm:$0xff]
        %v1684 = vld [vmem:[%s272 + $0x428] sm:$0xff]
        %v1685 = vld [vmem:[%s272 + $0x430] sm:$0xff]
        %v1686 = vld [vmem:[%s272 + $0x438] sm:$0xff]
        %v1687 = vld [vmem:[%s272 + $0x440] sm:$0xff]
        %v1688 = vld [vmem:[%s272 + $0x448] sm:$0xff]
        %v1689 = vld [vmem:[%s272 + $0x450] sm:$0xff]
        %v1690 = vld [vmem:[%s272 + $0x458] sm:$0xff]
        %v1691 = vld [vmem:[%s272 + $0x460] sm:$0xff]
        %v1692 = vld [vmem:[%s272 + $0x468] sm:$0xff]
        %v1693 = vld [vmem:[%s272 + $0x470] sm:$0xff]
        %v1694 = vld [vmem:[%s272 + $0x478] sm:$0xff]
        %v1695 = vld [vmem:[%s272 + $0x480] sm:$0xff]
        %v1696 = vld [vmem:[%s272 + $0x488] sm:$0xff]
        %v1697 = vld [vmem:[%s272 + $0x490] sm:$0xff]
        %v1698 = vld [vmem:[%s272 + $0x498] sm:$0xff]
        %v1699 = vld [vmem:[%s272 + $0x4a0] sm:$0xff]
        %v1700 = vld [vmem:[%s272 + $0x4a8] sm:$0xff]
        %v1701 = vld [vmem:[%s272 + $0x4b0] sm:$0xff]
        %v1702 = vld [vmem:[%s272 + $0x4b8] sm:$0xff]
        %v1703 = vld [vmem:[%s272 + $0x4c0] sm:$0xff]
        %v1704 = vld [vmem:[%s272 + $0x4c8] sm:$0xff]
        %v1705 = vld [vmem:[%s272 + $0x4d0] sm:$0xff]
        %v1706 = vld [vmem:[%s272 + $0x4d8] sm:$0xff]
        %v1707 = vld [vmem:[%s272 + $0x4e0] sm:$0xff]
        %v1708 = vld [vmem:[%s272 + $0x4e8] sm:$0xff]
        %v1709 = vld [vmem:[%s272 + $0x4f0] sm:$0xff]
        %v1710 = vld [vmem:[%s272 + $0x4f8] sm:$0xff]
        %v1711 = vld [vmem:[%s272 + $0x500] sm:$0xff]
        %v1712 = vld [vmem:[%s272 + $0x508] sm:$0xff]
        %v1713 = vld [vmem:[%s272 + $0x510] sm:$0xff]
        %v1714 = vld [vmem:[%s272 + $0x518] sm:$0xff]
        %v1715 = vld [vmem:[%s272 + $0x520] sm:$0xff]
        %v1716 = vld [vmem:[%s272 + $0x528] sm:$0xff]
        %v1717 = vld [vmem:[%s272 + $0x530] sm:$0xff]
        %v1718 = vld [vmem:[%s272 + $0x538] sm:$0xff]
        %v1719 = vld [vmem:[%s272 + $0x540] sm:$0xff]
        %v1720 = vld [vmem:[%s272 + $0x548] sm:$0xff]
        %v1721 = vld [vmem:[%s272 + $0x550] sm:$0xff]
        %v1722 = vld [vmem:[%s272 + $0x558] sm:$0xff]
        %v1723 = vld [vmem:[%s272 + $0x560] sm:$0xff]
        %v1724 = vld [vmem:[%s272 + $0x568] sm:$0xff]
        %v1725 = vld [vmem:[%s272 + $0x570] sm:$0xff]
        %v1726 = vld [vmem:[%s272 + $0x578] sm:$0xff]
        %v1727 = vld [vmem:[%s272 + $0x580] sm:$0xff]
        %v1728 = vld [vmem:[%s272 + $0x588] sm:$0xff]
        %v1729 = vld [vmem:[%s272 + $0x590] sm:$0xff]
        %v1730 = vld [vmem:[%s272 + $0x598] sm:$0xff]
        %v1731 = vld [vmem:[%s272 + $0x5a0] sm:$0xff]
        %v1732 = vld [vmem:[%s272 + $0x5a8] sm:$0xff]
        %v1733 = vld [vmem:[%s272 + $0x5b0] sm:$0xff]
        %v1734 = vld [vmem:[%s272 + $0x5b8] sm:$0xff]
        %v1735 = vld [vmem:[%s272 + $0x5c0] sm:$0xff]
        %v1736 = vld [vmem:[%s272 + $0x5c8] sm:$0xff]
        %v1737 = vld [vmem:[%s272 + $0x5d0] sm:$0xff]
        %v1738 = vld [vmem:[%s272 + $0x5d8] sm:$0xff]
        %v1739 = vld [vmem:[%s272 + $0x5e0] sm:$0xff]
        %v1740 = vld [vmem:[%s272 + $0x5e8] sm:$0xff]
        %v1741 = vld [vmem:[%s272 + $0x5f0] sm:$0xff]
        %v1742 = vld [vmem:[%s272 + $0x5f8] sm:$0xff]
        %v1743 = vld [vmem:[%s272 + $0x600] sm:$0xff]
        %v1744 = vld [vmem:[%s272 + $0x608] sm:$0xff]
        %v1745 = vld [vmem:[%s272 + $0x610] sm:$0xff]
        %v1746 = vld [vmem:[%s272 + $0x618] sm:$0xff]
        %v1747 = vld [vmem:[%s272 + $0x620] sm:$0xff]
        %v1748 = vld [vmem:[%s272 + $0x628] sm:$0xff]
        %v1749 = vld [vmem:[%s272 + $0x630] sm:$0xff]
        %v1750 = vld [vmem:[%s272 + $0x638] sm:$0xff]
        %v1751 = vld [vmem:[%s272 + $0x640] sm:$0xff]
        %v1752 = vld [vmem:[%s272 + $0x648] sm:$0xff]
        %v1753 = vld [vmem:[%s272 + $0x650] sm:$0xff]
        %v1754 = vld [vmem:[%s272 + $0x658] sm:$0xff]
        %v1755 = vld [vmem:[%s272 + $0x660] sm:$0xff]
        %v1756 = vld [vmem:[%s272 + $0x668] sm:$0xff]
        %v1757 = vld [vmem:[%s272 + $0x670] sm:$0xff]
        %v1758 = vld [vmem:[%s272 + $0x678] sm:$0xff]
        %v1759 = vld [vmem:[%s272 + $0x680] sm:$0xff]
        %v1760 = vld [vmem:[%s272 + $0x688] sm:$0xff]
        %v1761 = vld [vmem:[%s272 + $0x690] sm:$0xff]
        %v1762 = vld [vmem:[%s272 + $0x698] sm:$0xff]
        %v1763 = vld [vmem:[%s272 + $0x6a0] sm:$0xff]
        %v1764 = vld [vmem:[%s272 + $0x6a8] sm:$0xff]
        %v1765 = vld [vmem:[%s272 + $0x6b0] sm:$0xff]
        %v1766 = vld [vmem:[%s272 + $0x6b8] sm:$0xff]
        %v1767 = vld [vmem:[%s272 + $0x6c0] sm:$0xff]
        %v1768 = vld [vmem:[%s272 + $0x6c8] sm:$0xff]
        %v1769 = vld [vmem:[%s272 + $0x6d0] sm:$0xff]
        %v1770 = vld [vmem:[%s272 + $0x6d8] sm:$0xff]
        %v1771 = vld [vmem:[%s272 + $0x6e0] sm:$0xff]
        %v1772 = vld [vmem:[%s272 + $0x6e8] sm:$0xff]
        %v1773 = vld [vmem:[%s272 + $0x6f0] sm:$0xff]
        %v1774 = vld [vmem:[%s272 + $0x6f8] sm:$0xff]
        %v1775 = vld [vmem:[%s272 + $0x700] sm:$0xff]
        %v1776 = vld [vmem:[%s272 + $0x708] sm:$0xff]
        %v1777 = vld [vmem:[%s272 + $0x710] sm:$0xff]
        %v1778 = vld [vmem:[%s272 + $0x718] sm:$0xff]
        %v1779 = vld [vmem:[%s272 + $0x720] sm:$0xff]
        %v1780 = vld [vmem:[%s272 + $0x728] sm:$0xff]
        %v1781 = vld [vmem:[%s272 + $0x730] sm:$0xff]
        %v1782 = vld [vmem:[%s272 + $0x738] sm:$0xff]
        %v1783 = vld [vmem:[%s272 + $0x740] sm:$0xff]
        %v1784 = vld [vmem:[%s272 + $0x748] sm:$0xff]
        %v1785 = vld [vmem:[%s272 + $0x750] sm:$0xff]
        %v1786 = vld [vmem:[%s272 + $0x758] sm:$0xff]
        %v1787 = vld [vmem:[%s272 + $0x760] sm:$0xff]
        %v1788 = vld [vmem:[%s272 + $0x768] sm:$0xff]
        %v1789 = vld [vmem:[%s272 + $0x770] sm:$0xff]
        %v1790 = vld [vmem:[%s272 + $0x778] sm:$0xff]
        %v1791 = vld [vmem:[%s272 + $0x780] sm:$0xff]
        %v1792 = vld [vmem:[%s272 + $0x788] sm:$0xff]
        %v1793 = vld [vmem:[%s272 + $0x790] sm:$0xff]
        %v1794 = vld [vmem:[%s272 + $0x798] sm:$0xff]
        %v1795 = vld [vmem:[%s272 + $0x7a0] sm:$0xff]
        %v1796 = vld [vmem:[%s272 + $0x7a8] sm:$0xff]
        %v1797 = vld [vmem:[%s272 + $0x7b0] sm:$0xff]
        %v1798 = vld [vmem:[%s272 + $0x7b8] sm:$0xff]
        %v1799 = vld [vmem:[%s272 + $0x7c0] sm:$0xff]
        %v1800 = vld [vmem:[%s272 + $0x7c8] sm:$0xff]
        %v1801 = vld [vmem:[%s272 + $0x7d0] sm:$0xff]
        %v1802 = vld [vmem:[%s272 + $0x7d8] sm:$0xff]
        %v1803 = vld [vmem:[%s272 + $0x7e0] sm:$0xff]
        %v1804 = vld [vmem:[%s272 + $0x7e8] sm:$0xff]
        %v1805 = vld [vmem:[%s272 + $0x7f0] sm:$0xff]
        %v1806 = vld [vmem:[%s272 + $0x7f8] sm:$0xff]
        %v1807 = vsel %vm1295, %v1551, 0.0
        %v1808 = vsel %vm1296, %v1552, 0.0
        %v1809 = vsel %vm1297, %v1553, 0.0
        %v1810 = vsel %vm1298, %v1554, 0.0
        %v1811 = vsel %vm1299, %v1555, 0.0
        %v1812 = vsel %vm1300, %v1556, 0.0
        %v1813 = vsel %vm1301, %v1557, 0.0
        %v1814 = vsel %vm1302, %v1558, 0.0
        %v1815 = vsel %vm1303, %v1559, 0.0
        %v1816 = vsel %vm1304, %v1560, 0.0
        %v1817 = vsel %vm1305, %v1561, 0.0
        %v1818 = vsel %vm1306, %v1562, 0.0
        %v1819 = vsel %vm1307, %v1563, 0.0
        %v1820 = vsel %vm1308, %v1564, 0.0
        %v1821 = vsel %vm1309, %v1565, 0.0
        %v1822 = vsel %vm1310, %v1566, 0.0
        %v1823 = vsel %vm1311, %v1567, 0.0
        %v1824 = vsel %vm1312, %v1568, 0.0
        %v1825 = vsel %vm1313, %v1569, 0.0
        %v1826 = vsel %vm1314, %v1570, 0.0
        %v1827 = vsel %vm1315, %v1571, 0.0
        %v1828 = vsel %vm1316, %v1572, 0.0
        %v1829 = vsel %vm1317, %v1573, 0.0
        %v1830 = vsel %vm1318, %v1574, 0.0
        %v1831 = vsel %vm1319, %v1575, 0.0
        %v1832 = vsel %vm1320, %v1576, 0.0
        %v1833 = vsel %vm1321, %v1577, 0.0
        %v1834 = vsel %vm1322, %v1578, 0.0
        %v1835 = vsel %vm1323, %v1579, 0.0
        %v1836 = vsel %vm1324, %v1580, 0.0
        %v1837 = vsel %vm1325, %v1581, 0.0
        %v1838 = vsel %vm1326, %v1582, 0.0
        %v1839 = vsel %vm1327, %v1583, 0.0
        %v1840 = vsel %vm1328, %v1584, 0.0
        %v1841 = vsel %vm1329, %v1585, 0.0
        %v1842 = vsel %vm1330, %v1586, 0.0
        %v1843 = vsel %vm1331, %v1587, 0.0
        %v1844 = vsel %vm1332, %v1588, 0.0
        %v1845 = vsel %vm1333, %v1589, 0.0
        %v1846 = vsel %vm1334, %v1590, 0.0
        %v1847 = vsel %vm1335, %v1591, 0.0
        %v1848 = vsel %vm1336, %v1592, 0.0
        %v1849 = vsel %vm1337, %v1593, 0.0
        %v1850 = vsel %vm1338, %v1594, 0.0
        %v1851 = vsel %vm1339, %v1595, 0.0
        %v1852 = vsel %vm1340, %v1596, 0.0
        %v1853 = vsel %vm1341, %v1597, 0.0
        %v1854 = vsel %vm1342, %v1598, 0.0
        %v1855 = vsel %vm1343, %v1599, 0.0
        %v1856 = vsel %vm1344, %v1600, 0.0
        %v1857 = vsel %vm1345, %v1601, 0.0
        %v1858 = vsel %vm1346, %v1602, 0.0
        %v1859 = vsel %vm1347, %v1603, 0.0
        %v1860 = vsel %vm1348, %v1604, 0.0
        %v1861 = vsel %vm1349, %v1605, 0.0
        %v1862 = vsel %vm1350, %v1606, 0.0
        %v1863 = vsel %vm1351, %v1607, 0.0
        %v1864 = vsel %vm1352, %v1608, 0.0
        %v1865 = vsel %vm1353, %v1609, 0.0
        %v1866 = vsel %vm1354, %v1610, 0.0
        %v1867 = vsel %vm1355, %v1611, 0.0
        %v1868 = vsel %vm1356, %v1612, 0.0
        %v1869 = vsel %vm1357, %v1613, 0.0
        %v1870 = vsel %vm1358, %v1614, 0.0
        %v1871 = vsel %vm1359, %v1615, 0.0
        %v1872 = vsel %vm1360, %v1616, 0.0
        %v1873 = vsel %vm1361, %v1617, 0.0
        %v1874 = vsel %vm1362, %v1618, 0.0
        %v1875 = vsel %vm1363, %v1619, 0.0
        %v1876 = vsel %vm1364, %v1620, 0.0
        %v1877 = vsel %vm1365, %v1621, 0.0
        %v1878 = vsel %vm1366, %v1622, 0.0
        %v1879 = vsel %vm1367, %v1623, 0.0
        %v1880 = vsel %vm1368, %v1624, 0.0
        %v1881 = vsel %vm1369, %v1625, 0.0
        %v1882 = vsel %vm1370, %v1626, 0.0
        %v1883 = vsel %vm1371, %v1627, 0.0
        %v1884 = vsel %vm1372, %v1628, 0.0
        %v1885 = vsel %vm1373, %v1629, 0.0
        %v1886 = vsel %vm1374, %v1630, 0.0
        %v1887 = vsel %vm1375, %v1631, 0.0
        %v1888 = vsel %vm1376, %v1632, 0.0
        %v1889 = vsel %vm1377, %v1633, 0.0
        %v1890 = vsel %vm1378, %v1634, 0.0
        %v1891 = vsel %vm1379, %v1635, 0.0
        %v1892 = vsel %vm1380, %v1636, 0.0
        %v1893 = vsel %vm1381, %v1637, 0.0
        %v1894 = vsel %vm1382, %v1638, 0.0
        %v1895 = vsel %vm1383, %v1639, 0.0
        %v1896 = vsel %vm1384, %v1640, 0.0
        %v1897 = vsel %vm1385, %v1641, 0.0
        %v1898 = vsel %vm1386, %v1642, 0.0
        %v1899 = vsel %vm1387, %v1643, 0.0
        %v1900 = vsel %vm1388, %v1644, 0.0
        %v1901 = vsel %vm1389, %v1645, 0.0
        %v1902 = vsel %vm1390, %v1646, 0.0
        %v1903 = vsel %vm1391, %v1647, 0.0
        %v1904 = vsel %vm1392, %v1648, 0.0
        %v1905 = vsel %vm1393, %v1649, 0.0
        %v1906 = vsel %vm1394, %v1650, 0.0
        %v1907 = vsel %vm1395, %v1651, 0.0
        %v1908 = vsel %vm1396, %v1652, 0.0
        %v1909 = vsel %vm1397, %v1653, 0.0
        %v1910 = vsel %vm1398, %v1654, 0.0
        %v1911 = vsel %vm1399, %v1655, 0.0
        %v1912 = vsel %vm1400, %v1656, 0.0
        %v1913 = vsel %vm1401, %v1657, 0.0
        %v1914 = vsel %vm1402, %v1658, 0.0
        %v1915 = vsel %vm1403, %v1659, 0.0
        %v1916 = vsel %vm1404, %v1660, 0.0
        %v1917 = vsel %vm1405, %v1661, 0.0
        %v1918 = vsel %vm1406, %v1662, 0.0
        %v1919 = vsel %vm1407, %v1663, 0.0
        %v1920 = vsel %vm1408, %v1664, 0.0
        %v1921 = vsel %vm1409, %v1665, 0.0
        %v1922 = vsel %vm1410, %v1666, 0.0
        %v1923 = vsel %vm1411, %v1667, 0.0
        %v1924 = vsel %vm1412, %v1668, 0.0
        %v1925 = vsel %vm1413, %v1669, 0.0
        %v1926 = vsel %vm1414, %v1670, 0.0
        %v1927 = vsel %vm1415, %v1671, 0.0
        %v1928 = vsel %vm1416, %v1672, 0.0
        %v1929 = vsel %vm1417, %v1673, 0.0
        %v1930 = vsel %vm1418, %v1674, 0.0
        %v1931 = vsel %vm1419, %v1675, 0.0
        %v1932 = vsel %vm1420, %v1676, 0.0
        %v1933 = vsel %vm1421, %v1677, 0.0
        %v1934 = vsel %vm1422, %v1678, 0.0
        %v1935 = vsel %vm1423, %v1679, 0.0
        %v1936 = vsel %vm1424, %v1680, 0.0
        %v1937 = vsel %vm1425, %v1681, 0.0
        %v1938 = vsel %vm1426, %v1682, 0.0
        %v1939 = vsel %vm1427, %v1683, 0.0
        %v1940 = vsel %vm1428, %v1684, 0.0
        %v1941 = vsel %vm1429, %v1685, 0.0
        %v1942 = vsel %vm1430, %v1686, 0.0
        %v1943 = vsel %vm1431, %v1687, 0.0
        %v1944 = vsel %vm1432, %v1688, 0.0
        %v1945 = vsel %vm1433, %v1689, 0.0
        %v1946 = vsel %vm1434, %v1690, 0.0
        %v1947 = vsel %vm1435, %v1691, 0.0
        %v1948 = vsel %vm1436, %v1692, 0.0
        %v1949 = vsel %vm1437, %v1693, 0.0
        %v1950 = vsel %vm1438, %v1694, 0.0
        %v1951 = vsel %vm1439, %v1695, 0.0
        %v1952 = vsel %vm1440, %v1696, 0.0
        %v1953 = vsel %vm1441, %v1697, 0.0
        %v1954 = vsel %vm1442, %v1698, 0.0
        %v1955 = vsel %vm1443, %v1699, 0.0
        %v1956 = vsel %vm1444, %v1700, 0.0
        %v1957 = vsel %vm1445, %v1701, 0.0
        %v1958 = vsel %vm1446, %v1702, 0.0
        %v1959 = vsel %vm1447, %v1703, 0.0
        %v1960 = vsel %vm1448, %v1704, 0.0
        %v1961 = vsel %vm1449, %v1705, 0.0
        %v1962 = vsel %vm1450, %v1706, 0.0
        %v1963 = vsel %vm1451, %v1707, 0.0
        %v1964 = vsel %vm1452, %v1708, 0.0
        %v1965 = vsel %vm1453, %v1709, 0.0
        %v1966 = vsel %vm1454, %v1710, 0.0
        %v1967 = vsel %vm1455, %v1711, 0.0
        %v1968 = vsel %vm1456, %v1712, 0.0
        %v1969 = vsel %vm1457, %v1713, 0.0
        %v1970 = vsel %vm1458, %v1714, 0.0
        %v1971 = vsel %vm1459, %v1715, 0.0
        %v1972 = vsel %vm1460, %v1716, 0.0
        %v1973 = vsel %vm1461, %v1717, 0.0
        %v1974 = vsel %vm1462, %v1718, 0.0
        %v1975 = vsel %vm1463, %v1719, 0.0
        %v1976 = vsel %vm1464, %v1720, 0.0
        %v1977 = vsel %vm1465, %v1721, 0.0
        %v1978 = vsel %vm1466, %v1722, 0.0
        %v1979 = vsel %vm1467, %v1723, 0.0
        %v1980 = vsel %vm1468, %v1724, 0.0
        %v1981 = vsel %vm1469, %v1725, 0.0
        %v1982 = vsel %vm1470, %v1726, 0.0
        %v1983 = vsel %vm1471, %v1727, 0.0
        %v1984 = vsel %vm1472, %v1728, 0.0
        %v1985 = vsel %vm1473, %v1729, 0.0
        %v1986 = vsel %vm1474, %v1730, 0.0
        %v1987 = vsel %vm1475, %v1731, 0.0
        %v1988 = vsel %vm1476, %v1732, 0.0
        %v1989 = vsel %vm1477, %v1733, 0.0
        %v1990 = vsel %vm1478, %v1734, 0.0
        %v1991 = vsel %vm1479, %v1735, 0.0
        %v1992 = vsel %vm1480, %v1736, 0.0
        %v1993 = vsel %vm1481, %v1737, 0.0
        %v1994 = vsel %vm1482, %v1738, 0.0
        %v1995 = vsel %vm1483, %v1739, 0.0
        %v1996 = vsel %vm1484, %v1740, 0.0
        %v1997 = vsel %vm1485, %v1741, 0.0
        %v1998 = vsel %vm1486, %v1742, 0.0
        %v1999 = vsel %vm1487, %v1743, 0.0
        %v2000 = vsel %vm1488, %v1744, 0.0
        %v2001 = vsel %vm1489, %v1745, 0.0
        %v2002 = vsel %vm1490, %v1746, 0.0
        %v2003 = vsel %vm1491, %v1747, 0.0
        %v2004 = vsel %vm1492, %v1748, 0.0
        %v2005 = vsel %vm1493, %v1749, 0.0
        %v2006 = vsel %vm1494, %v1750, 0.0
        %v2007 = vsel %vm1495, %v1751, 0.0
        %v2008 = vsel %vm1496, %v1752, 0.0
        %v2009 = vsel %vm1497, %v1753, 0.0
        %v2010 = vsel %vm1498, %v1754, 0.0
        %v2011 = vsel %vm1499, %v1755, 0.0
        %v2012 = vsel %vm1500, %v1756, 0.0
        %v2013 = vsel %vm1501, %v1757, 0.0
        %v2014 = vsel %vm1502, %v1758, 0.0
        %v2015 = vsel %vm1503, %v1759, 0.0
        %v2016 = vsel %vm1504, %v1760, 0.0
        %v2017 = vsel %vm1505, %v1761, 0.0
        %v2018 = vsel %vm1506, %v1762, 0.0
        %v2019 = vsel %vm1507, %v1763, 0.0
        %v2020 = vsel %vm1508, %v1764, 0.0
        %v2021 = vsel %vm1509, %v1765, 0.0
        %v2022 = vsel %vm1510, %v1766, 0.0
        %v2023 = vsel %vm1511, %v1767, 0.0
        %v2024 = vsel %vm1512, %v1768, 0.0
        %v2025 = vsel %vm1513, %v1769, 0.0
        %v2026 = vsel %vm1514, %v1770, 0.0
        %v2027 = vsel %vm1515, %v1771, 0.0
        %v2028 = vsel %vm1516, %v1772, 0.0
        %v2029 = vsel %vm1517, %v1773, 0.0
        %v2030 = vsel %vm1518, %v1774, 0.0
        %v2031 = vsel %vm1519, %v1775, 0.0
        %v2032 = vsel %vm1520, %v1776, 0.0
        %v2033 = vsel %vm1521, %v1777, 0.0
        %v2034 = vsel %vm1522, %v1778, 0.0
        %v2035 = vsel %vm1523, %v1779, 0.0
        %v2036 = vsel %vm1524, %v1780, 0.0
        %v2037 = vsel %vm1525, %v1781, 0.0
        %v2038 = vsel %vm1526, %v1782, 0.0
        %v2039 = vsel %vm1527, %v1783, 0.0
        %v2040 = vsel %vm1528, %v1784, 0.0
        %v2041 = vsel %vm1529, %v1785, 0.0
        %v2042 = vsel %vm1530, %v1786, 0.0
        %v2043 = vsel %vm1531, %v1787, 0.0
        %v2044 = vsel %vm1532, %v1788, 0.0
        %v2045 = vsel %vm1533, %v1789, 0.0
        %v2046 = vsel %vm1534, %v1790, 0.0
        %v2047 = vsel %vm1535, %v1791, 0.0
        %v2048 = vsel %vm1536, %v1792, 0.0
        %v2049 = vsel %vm1537, %v1793, 0.0
        %v2050 = vsel %vm1538, %v1794, 0.0
        %v2051 = vsel %vm1539, %v1795, 0.0
        %v2052 = vsel %vm1540, %v1796, 0.0
        %v2053 = vsel %vm1541, %v1797, 0.0
        %v2054 = vsel %vm1542, %v1798, 0.0
        %v2055 = vsel %vm1543, %v1799, 0.0
        %v2056 = vsel %vm1544, %v1800, 0.0
        %v2057 = vsel %vm1545, %v1801, 0.0
        %v2058 = vsel %vm1546, %v1802, 0.0
        %v2059 = vsel %vm1547, %v1803, 0.0
        %v2060 = vsel %vm1548, %v1804, 0.0
        %v2061 = vsel %vm1549, %v1805, 0.0
        %v2062 = vsel %vm1550, %v1806, 0.0
        %2063 = vst [vmem:[%s316] sm:$0xff] %v1807
        %2064 = vst [vmem:[%s316 + $0x8] sm:$0xff] %v1808
        %2065 = vst [vmem:[%s316 + $0x10] sm:$0xff] %v1809
        %2066 = vst [vmem:[%s316 + $0x18] sm:$0xff] %v1810
        %2067 = vst [vmem:[%s316 + $0x20] sm:$0xff] %v1811
        %2068 = vst [vmem:[%s316 + $0x28] sm:$0xff] %v1812
        %2069 = vst [vmem:[%s316 + $0x30] sm:$0xff] %v1813
        %2070 = vst [vmem:[%s316 + $0x38] sm:$0xff] %v1814
        %2071 = vst [vmem:[%s316 + $0x40] sm:$0xff] %v1815
        %2072 = vst [vmem:[%s316 + $0x48] sm:$0xff] %v1816
        %2073 = vst [vmem:[%s316 + $0x50] sm:$0xff] %v1817
        %2074 = vst [vmem:[%s316 + $0x58] sm:$0xff] %v1818
        %2075 = vst [vmem:[%s316 + $0x60] sm:$0xff] %v1819
        %2076 = vst [vmem:[%s316 + $0x68] sm:$0xff] %v1820
        %2077 = vst [vmem:[%s316 + $0x70] sm:$0xff] %v1821
        %2078 = vst [vmem:[%s316 + $0x78] sm:$0xff] %v1822
        %2079 = vst [vmem:[%s316 + $0x80] sm:$0xff] %v1823
        %2080 = vst [vmem:[%s316 + $0x88] sm:$0xff] %v1824
        %2081 = vst [vmem:[%s316 + $0x90] sm:$0xff] %v1825
        %2082 = vst [vmem:[%s316 + $0x98] sm:$0xff] %v1826
        %2083 = vst [vmem:[%s316 + $0xa0] sm:$0xff] %v1827
        %2084 = vst [vmem:[%s316 + $0xa8] sm:$0xff] %v1828
        %2085 = vst [vmem:[%s316 + $0xb0] sm:$0xff] %v1829
        %2086 = vst [vmem:[%s316 + $0xb8] sm:$0xff] %v1830
        %2087 = vst [vmem:[%s316 + $0xc0] sm:$0xff] %v1831
        %2088 = vst [vmem:[%s316 + $0xc8] sm:$0xff] %v1832
        %2089 = vst [vmem:[%s316 + $0xd0] sm:$0xff] %v1833
        %2090 = vst [vmem:[%s316 + $0xd8] sm:$0xff] %v1834
        %2091 = vst [vmem:[%s316 + $0xe0] sm:$0xff] %v1835
        %2092 = vst [vmem:[%s316 + $0xe8] sm:$0xff] %v1836
        %2093 = vst [vmem:[%s316 + $0xf0] sm:$0xff] %v1837
        %2094 = vst [vmem:[%s316 + $0xf8] sm:$0xff] %v1838
        %2095 = vst [vmem:[%s316 + $0x100] sm:$0xff] %v1839
        %2096 = vst [vmem:[%s316 + $0x108] sm:$0xff] %v1840
        %2097 = vst [vmem:[%s316 + $0x110] sm:$0xff] %v1841
        %2098 = vst [vmem:[%s316 + $0x118] sm:$0xff] %v1842
        %2099 = vst [vmem:[%s316 + $0x120] sm:$0xff] %v1843
        %2100 = vst [vmem:[%s316 + $0x128] sm:$0xff] %v1844
        %2101 = vst [vmem:[%s316 + $0x130] sm:$0xff] %v1845
        %2102 = vst [vmem:[%s316 + $0x138] sm:$0xff] %v1846
        %2103 = vst [vmem:[%s316 + $0x140] sm:$0xff] %v1847
        %2104 = vst [vmem:[%s316 + $0x148] sm:$0xff] %v1848
        %2105 = vst [vmem:[%s316 + $0x150] sm:$0xff] %v1849
        %2106 = vst [vmem:[%s316 + $0x158] sm:$0xff] %v1850
        %2107 = vst [vmem:[%s316 + $0x160] sm:$0xff] %v1851
        %2108 = vst [vmem:[%s316 + $0x168] sm:$0xff] %v1852
        %2109 = vst [vmem:[%s316 + $0x170] sm:$0xff] %v1853
        %2110 = vst [vmem:[%s316 + $0x178] sm:$0xff] %v1854
        %2111 = vst [vmem:[%s316 + $0x180] sm:$0xff] %v1855
        %2112 = vst [vmem:[%s316 + $0x188] sm:$0xff] %v1856
        %2113 = vst [vmem:[%s316 + $0x190] sm:$0xff] %v1857
        %2114 = vst [vmem:[%s316 + $0x198] sm:$0xff] %v1858
        %2115 = vst [vmem:[%s316 + $0x1a0] sm:$0xff] %v1859
        %2116 = vst [vmem:[%s316 + $0x1a8] sm:$0xff] %v1860
        %2117 = vst [vmem:[%s316 + $0x1b0] sm:$0xff] %v1861
        %2118 = vst [vmem:[%s316 + $0x1b8] sm:$0xff] %v1862
        %2119 = vst [vmem:[%s316 + $0x1c0] sm:$0xff] %v1863
        %2120 = vst [vmem:[%s316 + $0x1c8] sm:$0xff] %v1864
        %2121 = vst [vmem:[%s316 + $0x1d0] sm:$0xff] %v1865
        %2122 = vst [vmem:[%s316 + $0x1d8] sm:$0xff] %v1866
        %2123 = vst [vmem:[%s316 + $0x1e0] sm:$0xff] %v1867
        %2124 = vst [vmem:[%s316 + $0x1e8] sm:$0xff] %v1868
        %2125 = vst [vmem:[%s316 + $0x1f0] sm:$0xff] %v1869
        %2126 = vst [vmem:[%s316 + $0x1f8] sm:$0xff] %v1870
        %2127 = vst [vmem:[%s316 + $0x200] sm:$0xff] %v1871
        %2128 = vst [vmem:[%s316 + $0x208] sm:$0xff] %v1872
        %2129 = vst [vmem:[%s316 + $0x210] sm:$0xff] %v1873
        %2130 = vst [vmem:[%s316 + $0x218] sm:$0xff] %v1874
        %2131 = vst [vmem:[%s316 + $0x220] sm:$0xff] %v1875
        %2132 = vst [vmem:[%s316 + $0x228] sm:$0xff] %v1876
        %2133 = vst [vmem:[%s316 + $0x230] sm:$0xff] %v1877
        %2134 = vst [vmem:[%s316 + $0x238] sm:$0xff] %v1878
        %2135 = vst [vmem:[%s316 + $0x240] sm:$0xff] %v1879
        %2136 = vst [vmem:[%s316 + $0x248] sm:$0xff] %v1880
        %2137 = vst [vmem:[%s316 + $0x250] sm:$0xff] %v1881
        %2138 = vst [vmem:[%s316 + $0x258] sm:$0xff] %v1882
        %2139 = vst [vmem:[%s316 + $0x260] sm:$0xff] %v1883
        %2140 = vst [vmem:[%s316 + $0x268] sm:$0xff] %v1884
        %2141 = vst [vmem:[%s316 + $0x270] sm:$0xff] %v1885
        %2142 = vst [vmem:[%s316 + $0x278] sm:$0xff] %v1886
        %2143 = vst [vmem:[%s316 + $0x280] sm:$0xff] %v1887
        %2144 = vst [vmem:[%s316 + $0x288] sm:$0xff] %v1888
        %2145 = vst [vmem:[%s316 + $0x290] sm:$0xff] %v1889
        %2146 = vst [vmem:[%s316 + $0x298] sm:$0xff] %v1890
        %2147 = vst [vmem:[%s316 + $0x2a0] sm:$0xff] %v1891
        %2148 = vst [vmem:[%s316 + $0x2a8] sm:$0xff] %v1892
        %2149 = vst [vmem:[%s316 + $0x2b0] sm:$0xff] %v1893
        %2150 = vst [vmem:[%s316 + $0x2b8] sm:$0xff] %v1894
        %2151 = vst [vmem:[%s316 + $0x2c0] sm:$0xff] %v1895
        %2152 = vst [vmem:[%s316 + $0x2c8] sm:$0xff] %v1896
        %2153 = vst [vmem:[%s316 + $0x2d0] sm:$0xff] %v1897
        %2154 = vst [vmem:[%s316 + $0x2d8] sm:$0xff] %v1898
        %2155 = vst [vmem:[%s316 + $0x2e0] sm:$0xff] %v1899
        %2156 = vst [vmem:[%s316 + $0x2e8] sm:$0xff] %v1900
        %2157 = vst [vmem:[%s316 + $0x2f0] sm:$0xff] %v1901
        %2158 = vst [vmem:[%s316 + $0x2f8] sm:$0xff] %v1902
        %2159 = vst [vmem:[%s316 + $0x300] sm:$0xff] %v1903
        %2160 = vst [vmem:[%s316 + $0x308] sm:$0xff] %v1904
        %2161 = vst [vmem:[%s316 + $0x310] sm:$0xff] %v1905
        %2162 = vst [vmem:[%s316 + $0x318] sm:$0xff] %v1906
        %2163 = vst [vmem:[%s316 + $0x320] sm:$0xff] %v1907
        %2164 = vst [vmem:[%s316 + $0x328] sm:$0xff] %v1908
        %2165 = vst [vmem:[%s316 + $0x330] sm:$0xff] %v1909
        %2166 = vst [vmem:[%s316 + $0x338] sm:$0xff] %v1910
        %2167 = vst [vmem:[%s316 + $0x340] sm:$0xff] %v1911
        %2168 = vst [vmem:[%s316 + $0x348] sm:$0xff] %v1912
        %2169 = vst [vmem:[%s316 + $0x350] sm:$0xff] %v1913
        %2170 = vst [vmem:[%s316 + $0x358] sm:$0xff] %v1914
        %2171 = vst [vmem:[%s316 + $0x360] sm:$0xff] %v1915
        %2172 = vst [vmem:[%s316 + $0x368] sm:$0xff] %v1916
        %2173 = vst [vmem:[%s316 + $0x370] sm:$0xff] %v1917
        %2174 = vst [vmem:[%s316 + $0x378] sm:$0xff] %v1918
        %2175 = vst [vmem:[%s316 + $0x380] sm:$0xff] %v1919
        %2176 = vst [vmem:[%s316 + $0x388] sm:$0xff] %v1920
        %2177 = vst [vmem:[%s316 + $0x390] sm:$0xff] %v1921
        %2178 = vst [vmem:[%s316 + $0x398] sm:$0xff] %v1922
        %2179 = vst [vmem:[%s316 + $0x3a0] sm:$0xff] %v1923
        %2180 = vst [vmem:[%s316 + $0x3a8] sm:$0xff] %v1924
        %2181 = vst [vmem:[%s316 + $0x3b0] sm:$0xff] %v1925
        %2182 = vst [vmem:[%s316 + $0x3b8] sm:$0xff] %v1926
        %2183 = vst [vmem:[%s316 + $0x3c0] sm:$0xff] %v1927
        %2184 = vst [vmem:[%s316 + $0x3c8] sm:$0xff] %v1928
        %2185 = vst [vmem:[%s316 + $0x3d0] sm:$0xff] %v1929
        %2186 = vst [vmem:[%s316 + $0x3d8] sm:$0xff] %v1930
        %2187 = vst [vmem:[%s316 + $0x3e0] sm:$0xff] %v1931
        %2188 = vst [vmem:[%s316 + $0x3e8] sm:$0xff] %v1932
        %2189 = vst [vmem:[%s316 + $0x3f0] sm:$0xff] %v1933
        %2190 = vst [vmem:[%s316 + $0x3f8] sm:$0xff] %v1934
        %2191 = vst [vmem:[%s316 + $0x400] sm:$0xff] %v1935
        %2192 = vst [vmem:[%s316 + $0x408] sm:$0xff] %v1936
        %2193 = vst [vmem:[%s316 + $0x410] sm:$0xff] %v1937
        %2194 = vst [vmem:[%s316 + $0x418] sm:$0xff] %v1938
        %2195 = vst [vmem:[%s316 + $0x420] sm:$0xff] %v1939
        %2196 = vst [vmem:[%s316 + $0x428] sm:$0xff] %v1940
        %2197 = vst [vmem:[%s316 + $0x430] sm:$0xff] %v1941
        %2198 = vst [vmem:[%s316 + $0x438] sm:$0xff] %v1942
        %2199 = vst [vmem:[%s316 + $0x440] sm:$0xff] %v1943
        %2200 = vst [vmem:[%s316 + $0x448] sm:$0xff] %v1944
        %2201 = vst [vmem:[%s316 + $0x450] sm:$0xff] %v1945
        %2202 = vst [vmem:[%s316 + $0x458] sm:$0xff] %v1946
        %2203 = vst [vmem:[%s316 + $0x460] sm:$0xff] %v1947
        %2204 = vst [vmem:[%s316 + $0x468] sm:$0xff] %v1948
        %2205 = vst [vmem:[%s316 + $0x470] sm:$0xff] %v1949
        %2206 = vst [vmem:[%s316 + $0x478] sm:$0xff] %v1950
        %2207 = vst [vmem:[%s316 + $0x480] sm:$0xff] %v1951
        %2208 = vst [vmem:[%s316 + $0x488] sm:$0xff] %v1952
        %2209 = vst [vmem:[%s316 + $0x490] sm:$0xff] %v1953
        %2210 = vst [vmem:[%s316 + $0x498] sm:$0xff] %v1954
        %2211 = vst [vmem:[%s316 + $0x4a0] sm:$0xff] %v1955
        %2212 = vst [vmem:[%s316 + $0x4a8] sm:$0xff] %v1956
        %2213 = vst [vmem:[%s316 + $0x4b0] sm:$0xff] %v1957
        %2214 = vst [vmem:[%s316 + $0x4b8] sm:$0xff] %v1958
        %2215 = vst [vmem:[%s316 + $0x4c0] sm:$0xff] %v1959
        %2216 = vst [vmem:[%s316 + $0x4c8] sm:$0xff] %v1960
        %2217 = vst [vmem:[%s316 + $0x4d0] sm:$0xff] %v1961
        %2218 = vst [vmem:[%s316 + $0x4d8] sm:$0xff] %v1962
        %2219 = vst [vmem:[%s316 + $0x4e0] sm:$0xff] %v1963
        %2220 = vst [vmem:[%s316 + $0x4e8] sm:$0xff] %v1964
        %2221 = vst [vmem:[%s316 + $0x4f0] sm:$0xff] %v1965
        %2222 = vst [vmem:[%s316 + $0x4f8] sm:$0xff] %v1966
        %2223 = vst [vmem:[%s316 + $0x500] sm:$0xff] %v1967
        %2224 = vst [vmem:[%s316 + $0x508] sm:$0xff] %v1968
        %2225 = vst [vmem:[%s316 + $0x510] sm:$0xff] %v1969
        %2226 = vst [vmem:[%s316 + $0x518] sm:$0xff] %v1970
        %2227 = vst [vmem:[%s316 + $0x520] sm:$0xff] %v1971
        %2228 = vst [vmem:[%s316 + $0x528] sm:$0xff] %v1972
        %2229 = vst [vmem:[%s316 + $0x530] sm:$0xff] %v1973
        %2230 = vst [vmem:[%s316 + $0x538] sm:$0xff] %v1974
        %2231 = vst [vmem:[%s316 + $0x540] sm:$0xff] %v1975
        %2232 = vst [vmem:[%s316 + $0x548] sm:$0xff] %v1976
        %2233 = vst [vmem:[%s316 + $0x550] sm:$0xff] %v1977
        %2234 = vst [vmem:[%s316 + $0x558] sm:$0xff] %v1978
        %2235 = vst [vmem:[%s316 + $0x560] sm:$0xff] %v1979
        %2236 = vst [vmem:[%s316 + $0x568] sm:$0xff] %v1980
        %2237 = vst [vmem:[%s316 + $0x570] sm:$0xff] %v1981
        %2238 = vst [vmem:[%s316 + $0x578] sm:$0xff] %v1982
        %2239 = vst [vmem:[%s316 + $0x580] sm:$0xff] %v1983
        %2240 = vst [vmem:[%s316 + $0x588] sm:$0xff] %v1984
        %2241 = vst [vmem:[%s316 + $0x590] sm:$0xff] %v1985
        %2242 = vst [vmem:[%s316 + $0x598] sm:$0xff] %v1986
        %2243 = vst [vmem:[%s316 + $0x5a0] sm:$0xff] %v1987
        %2244 = vst [vmem:[%s316 + $0x5a8] sm:$0xff] %v1988
        %2245 = vst [vmem:[%s316 + $0x5b0] sm:$0xff] %v1989
        %2246 = vst [vmem:[%s316 + $0x5b8] sm:$0xff] %v1990
        %2247 = vst [vmem:[%s316 + $0x5c0] sm:$0xff] %v1991
        %2248 = vst [vmem:[%s316 + $0x5c8] sm:$0xff] %v1992
        %2249 = vst [vmem:[%s316 + $0x5d0] sm:$0xff] %v1993
        %2250 = vst [vmem:[%s316 + $0x5d8] sm:$0xff] %v1994
        %2251 = vst [vmem:[%s316 + $0x5e0] sm:$0xff] %v1995
        %2252 = vst [vmem:[%s316 + $0x5e8] sm:$0xff] %v1996
        %2253 = vst [vmem:[%s316 + $0x5f0] sm:$0xff] %v1997
        %2254 = vst [vmem:[%s316 + $0x5f8] sm:$0xff] %v1998
        %2255 = vst [vmem:[%s316 + $0x600] sm:$0xff] %v1999
        %2256 = vst [vmem:[%s316 + $0x608] sm:$0xff] %v2000
        %2257 = vst [vmem:[%s316 + $0x610] sm:$0xff] %v2001
        %2258 = vst [vmem:[%s316 + $0x618] sm:$0xff] %v2002
        %2259 = vst [vmem:[%s316 + $0x620] sm:$0xff] %v2003
        %2260 = vst [vmem:[%s316 + $0x628] sm:$0xff] %v2004
        %2261 = vst [vmem:[%s316 + $0x630] sm:$0xff] %v2005
        %2262 = vst [vmem:[%s316 + $0x638] sm:$0xff] %v2006
        %2263 = vst [vmem:[%s316 + $0x640] sm:$0xff] %v2007
        %2264 = vst [vmem:[%s316 + $0x648] sm:$0xff] %v2008
        %2265 = vst [vmem:[%s316 + $0x650] sm:$0xff] %v2009
        %2266 = vst [vmem:[%s316 + $0x658] sm:$0xff] %v2010
        %2267 = vst [vmem:[%s316 + $0x660] sm:$0xff] %v2011
        %2268 = vst [vmem:[%s316 + $0x668] sm:$0xff] %v2012
        %2269 = vst [vmem:[%s316 + $0x670] sm:$0xff] %v2013
        %2270 = vst [vmem:[%s316 + $0x678] sm:$0xff] %v2014
        %2271 = vst [vmem:[%s316 + $0x680] sm:$0xff] %v2015
        %2272 = vst [vmem:[%s316 + $0x688] sm:$0xff] %v2016
        %2273 = vst [vmem:[%s316 + $0x690] sm:$0xff] %v2017
        %2274 = vst [vmem:[%s316 + $0x698] sm:$0xff] %v2018
        %2275 = vst [vmem:[%s316 + $0x6a0] sm:$0xff] %v2019
        %2276 = vst [vmem:[%s316 + $0x6a8] sm:$0xff] %v2020
        %2277 = vst [vmem:[%s316 + $0x6b0] sm:$0xff] %v2021
        %2278 = vst [vmem:[%s316 + $0x6b8] sm:$0xff] %v2022
        %2279 = vst [vmem:[%s316 + $0x6c0] sm:$0xff] %v2023
        %2280 = vst [vmem:[%s316 + $0x6c8] sm:$0xff] %v2024
        %2281 = vst [vmem:[%s316 + $0x6d0] sm:$0xff] %v2025
        %2282 = vst [vmem:[%s316 + $0x6d8] sm:$0xff] %v2026
        %2283 = vst [vmem:[%s316 + $0x6e0] sm:$0xff] %v2027
        %2284 = vst [vmem:[%s316 + $0x6e8] sm:$0xff] %v2028
        %2285 = vst [vmem:[%s316 + $0x6f0] sm:$0xff] %v2029
        %2286 = vst [vmem:[%s316 + $0x6f8] sm:$0xff] %v2030
        %2287 = vst [vmem:[%s316 + $0x700] sm:$0xff] %v2031
        %2288 = vst [vmem:[%s316 + $0x708] sm:$0xff] %v2032
        %2289 = vst [vmem:[%s316 + $0x710] sm:$0xff] %v2033
        %2290 = vst [vmem:[%s316 + $0x718] sm:$0xff] %v2034
        %2291 = vst [vmem:[%s316 + $0x720] sm:$0xff] %v2035
        %2292 = vst [vmem:[%s316 + $0x728] sm:$0xff] %v2036
        %2293 = vst [vmem:[%s316 + $0x730] sm:$0xff] %v2037
        %2294 = vst [vmem:[%s316 + $0x738] sm:$0xff] %v2038
        %2295 = vst [vmem:[%s316 + $0x740] sm:$0xff] %v2039
        %2296 = vst [vmem:[%s316 + $0x748] sm:$0xff] %v2040
        %2297 = vst [vmem:[%s316 + $0x750] sm:$0xff] %v2041
        %2298 = vst [vmem:[%s316 + $0x758] sm:$0xff] %v2042
        %2299 = vst [vmem:[%s316 + $0x760] sm:$0xff] %v2043
        %2300 = vst [vmem:[%s316 + $0x768] sm:$0xff] %v2044
        %2301 = vst [vmem:[%s316 + $0x770] sm:$0xff] %v2045
        %2302 = vst [vmem:[%s316 + $0x778] sm:$0xff] %v2046
        %2303 = vst [vmem:[%s316 + $0x780] sm:$0xff] %v2047
        %2304 = vst [vmem:[%s316 + $0x788] sm:$0xff] %v2048
        %2305 = vst [vmem:[%s316 + $0x790] sm:$0xff] %v2049
        %2306 = vst [vmem:[%s316 + $0x798] sm:$0xff] %v2050
        %2307 = vst [vmem:[%s316 + $0x7a0] sm:$0xff] %v2051
        %2308 = vst [vmem:[%s316 + $0x7a8] sm:$0xff] %v2052
        %2309 = vst [vmem:[%s316 + $0x7b0] sm:$0xff] %v2053
        %2310 = vst [vmem:[%s316 + $0x7b8] sm:$0xff] %v2054
        %2311 = vst [vmem:[%s316 + $0x7c0] sm:$0xff] %v2055
        %2312 = vst [vmem:[%s316 + $0x7c8] sm:$0xff] %v2056
        %2313 = vst [vmem:[%s316 + $0x7d0] sm:$0xff] %v2057
        %2314 = vst [vmem:[%s316 + $0x7d8] sm:$0xff] %v2058
        %2315 = vst [vmem:[%s316 + $0x7e0] sm:$0xff] %v2059
        %2316 = vst [vmem:[%s316 + $0x7e8] sm:$0xff] %v2060
        %2317 = vst [vmem:[%s316 + $0x7f0] sm:$0xff] %v2061
        %2318 = vst [vmem:[%s316 + $0x7f8] sm:$0xff] %v2062
        %s2319 = sand.u32 %s130, 1
        %s2320 = scalar_lea.sflag [#allocation4], %s2319
        %s2321 = sand.u32 %s130, 1
        %s2322 = smul.addr %s2321, 8
        %s2323 = scalar_lea.vmem [#allocation7], %s2322
        %s2324 = sand.u32 %s158, 1
        %s2325 = scalar_lea.sflag [#allocation9], %s2324
        %s2326 = sand.u32 %s158, 1
        %s2327 = smul.addr %s2326, 2048
        %s2328 = scalar_lea.vmem [#allocation8], %s2327
        // Predicated region
        $region41: #{tpu_custom_call.1} parent=31 // pred_check
          %p2329 = pneg %p140
        $region42: #{tpu_custom_call.1} parent=31 // pred_check_branch
          %2331 = sbr.rel (%p2329) target = $region44
        $region43: #{tpu_custom_call.1} parent=31 // pred_region
          %s2332 = smul.u32 4, %s32
          %s2334 = ssub.s32 128, 128
          %2335 = vsyncadd %s2320, %s2334
          %s2336 = smul.addr %s2332, 2
          %s2337 = smul.addr %s2336, 16
          %s2338 = scalar_lea.hbm %s3, %s2337
          %s2339 = sshll.u32 %s2323, 4
          %s2340 = int_to_ptr.vmem [resolvable:$true] %s2339
          %2345 = dma.vmem_to_hbm [thread:$0]  %s2340, 128, %s2338, %s2320, 32, 32, 2
        $region44: #{tpu_custom_call.1} parent=31 // pred_fallthru
          _
        // Predicated region
        $region45: #{tpu_custom_call.1} parent=31 // pred_check
          %p2346 = pneg %p168
        $region46: #{tpu_custom_call.1} parent=31 // pred_check_branch
          %2348 = sbr.rel (%p2346) target = $region48
        $region47: #{tpu_custom_call.1} parent=31 // pred_region
          %s2349 = smul.u32 4, %s32
          %s2350 = smul.u32 32, %s33
          %s2352 = ssub.s32 32768, 32768
          %2353 = vsyncadd %s2325, %s2352
          %s2354 = smul.addr %s2350, 2
          %s2355 = smul.addr %s2349, 64
          %s2356 = sadd.s32 %s2354, %s2355
          %s2357 = smul.addr %s2356, 128
          %s2358 = scalar_lea.hbm %s4, %s2357
          %s2359 = sshll.u32 %s2328, 4
          %s2360 = int_to_ptr.vmem [resolvable:$true] %s2359
          %2365 = dma.vmem_to_hbm [thread:$0]  %s2360, 32768, %s2358, %s2325, 256, 256, 16
        $region48: #{tpu_custom_call.1} parent=31 // pred_fallthru
          _
      $region32: #{tpu_custom_call.1} parent=5 // pred_fallthru
        _
      %p2366 = scmp.le.s32.totalorder 2, %s23
      // Predicated region
      $region49: #{tpu_custom_call.1} parent=5 // pred_check
        %p2367 = pneg %p2366
      $region50: #{tpu_custom_call.1} parent=5 // pred_check_branch
        %2369 = sbr.rel (%p2367) target = $region52
      $region51: #{tpu_custom_call.1} parent=5 // pred_region
        %s2370 = ssub.s32 %s23, 2
        // Predicated region
        $region53: #{tpu_custom_call.1} parent=51 // pred_check
          %p2371 = pneg %p146
        $region54: #{tpu_custom_call.1} parent=51 // pred_check_branch
          %2373 = sbr.rel (%p2371) target = $region56
        $region55: #{tpu_custom_call.1} parent=51 // pred_region
          %s2374 = sand.u32 %s131, 1
          %s2375 = scalar_lea.sflag [#allocation4], %s2374
          %s2376 = sand.u32 %s131, 1
          %s2377 = smul.addr %s2376, 8
          %s2378 = scalar_lea.vmem [#allocation7], %s2377
          %2379 = dma.done %s2375, 128
        $region56: #{tpu_custom_call.1} parent=51 // pred_fallthru
          _
        // Predicated region
        $region57: #{tpu_custom_call.1} parent=51 // pred_check
          %p2380 = pneg %p174
        $region58: #{tpu_custom_call.1} parent=51 // pred_check_branch
          %2382 = sbr.rel (%p2380) target = $region60
        $region59: #{tpu_custom_call.1} parent=51 // pred_region
          %s2383 = sand.u32 %s159, 1
          %s2384 = scalar_lea.sflag [#allocation9], %s2383
          %s2385 = sand.u32 %s159, 1
          %s2386 = smul.addr %s2385, 2048
          %s2387 = scalar_lea.vmem [#allocation8], %s2386
          %2388 = dma.done %s2384, 32768
        $region60: #{tpu_custom_call.1} parent=51 // pred_fallthru
          _
      $region52: #{tpu_custom_call.1} parent=5 // pred_fallthru
        _
    $region6: #{tpu_custom_call.1} parent=1 // loop_footer
      %s27 = sadd.s32 1, %s23
    $region7: #{tpu_custom_call.1} parent=1 // loop_footer_branch
      %22 = sbr.rel target = $region3
    $region8: #{tpu_custom_call.1} parent=1 // loop_exit
      _
    %2389 = vsyncpa [#allocation3], 1
    %s2390 = scalar_lea.sflag [#allocation3], 1
    %2391 = vsyncpa %s2390, 1
    %2392 = vsyncpa [#allocation6], 1
    %s2393 = scalar_lea.sflag [#allocation6], 1
    %2394 = vsyncpa %s2393, 1
    %2395 = vsyncpa [#allocation4], 1
    %s2396 = scalar_lea.sflag [#allocation4], 1
    %2397 = vsyncpa %s2396, 1
    %2398 = vsyncpa [#allocation9], 1
    %s2399 = scalar_lea.sflag [#allocation9], 1
    %2400 = vsyncpa %s2399, 1

</llo_original>
